<compile_context>
chip_gen: v5e
topology: v5e:2x2
jax: 0.10.0
libtpu: 0.0.40
codegen_flags: <defaults>
</compile_context>

<pallas_src>
import functools

import jax
import jax.numpy as jnp
import numpy as np
from jax import lax
from jax.experimental import pallas as pl
from jax.experimental.pallas import tpu as pltpu


# dot_general dimension numbers (avoid materializing transposes):
_DN_XWT = (((1,), (1,)), ((), ()))   # contract last dims of both:  x @ w.T
_DN_STD = (((1,), (0,)), ((), ()))   # standard matmul:             a @ b


def _coattn_kernel(qs_ref, v_ref, Wv_ref, bv_ref, Wq_ref, bq_ref,
                   wvw_ref, wqw_ref, out_ref, *, mxu_dtype):
    f32 = jnp.float32
    L, B, T, Dp = qs_ref.shape
    Nv = v_ref.shape[1]

    # ---- Image-side tensors: level-invariant, computed once ----
    V3 = v_ref[...]                                   # (B, Nv, Dp) f32
    V_all = V3.reshape(B * Nv, Dp)                    # layout-preserving (Dp % 128 == 0)
    Vm = V3.astype(mxu_dtype)

    Wv_m = Wv_ref[...].astype(mxu_dtype)
    Wq_m = Wq_ref[...].astype(mxu_dtype)
    bv = bv_ref[...]
    bq = bq_ref[...]
    wvw = wvw_ref[...]
    wqw = wqw_ref[...]

    # W_v V + b_v once for all hierarchy levels (B folded into M).
    WvV_all = lax.dot_general(V_all.astype(mxu_dtype), Wv_m, _DN_XWT,
                              preferred_element_type=f32) + bv        # (B*Nv, Dp)
    WvV3 = WvV_all.reshape(B, Nv, Dp)
    WvV3_m = WvV3.astype(mxu_dtype)

    def segment_softmax_attend(scores, X_all, seg):
        """Per-sample softmax over each length-`seg` lane segment of `scores`
        (1, B*seg), then the attention-weighted sum of X_all (B*seg, Dp),
        done as ONE block-diagonal (B, B*seg) @ (B*seg, Dp) MXU matmul."""
        n = B * seg
        m = jnp.max(scores, axis=-1, keepdims=True)     # global shift is fine: softmax is shift-invariant
        e = jnp.exp(scores - m)                         # (1, n)
        eb = jnp.broadcast_to(e, (B, n))
        col = lax.broadcasted_iota(jnp.int32, (B, n), 1)
        row = lax.broadcasted_iota(jnp.int32, (B, n), 0)
        lo = row * seg
        E = jnp.where((col >= lo) & (col < lo + seg), eb, 0.0)   # block-diag exp scores
        denom = jnp.sum(E, axis=-1, keepdims=True)               # (B, 1) lane reduction
        num = lax.dot_general(E, X_all, _DN_STD, preferred_element_type=f32)  # (B, Dp)
        return num * pl.reciprocal(denom, approx=True)           # divide on the EUP

    # L is tiny and static -> fully unrolled; no grid / pl.when machinery.
    for l in range(L):
        Q3 = qs_ref[l]                                           # (B, T, Dp) f32
        Q_all = Q3.reshape(B * T, Dp)
        Qm = Q3.astype(mxu_dtype)

        # Affinity computed ONCE; its transpose is obtained by contraction-dim
        # choice in the H_v einsum below (no second matmul / tanh).
        C = jnp.tanh(jnp.einsum('btd,bnd->btn', Qm, Vm,
                                preferred_element_type=f32))     # (B, T, Nv)
        Cm = C.astype(mxu_dtype)

        # W_q Q + b_q (B folded into M).
        WqQ_all = lax.dot_general(Q_all.astype(mxu_dtype), Wq_m, _DN_XWT,
                                  preferred_element_type=f32) + bq   # (B*T, Dp)
        WqQ3 = WqQ_all.reshape(B, T, Dp)

        Hv = jnp.tanh(WvV3 + jnp.einsum('btn,btd->bnd', Cm, WqQ3.astype(mxu_dtype),
                                        preferred_element_type=f32))   # (B, Nv, Dp)
        Hq = jnp.tanh(WqQ3 + jnp.einsum('btn,bnd->btd', Cm, WvV3_m,
                                        preferred_element_type=f32))   # (B, T, Dp)

        # Lane-major scores: one M=1 matmul per stream for the WHOLE batch.
        # (w_v / w_q biases dropped: softmax is shift-invariant.)
        s_v = lax.dot_general(wvw, Hv.reshape(B * Nv, Dp), _DN_XWT,
                              preferred_element_type=f32)              # (1, B*Nv)
        s_q = lax.dot_general(wqw, Hq.reshape(B * T, Dp), _DN_XWT,
                              preferred_element_type=f32)              # (1, B*T)

        v_l = segment_softmax_attend(s_v, V_all, Nv)                   # (B, Dp)
        q_l = segment_softmax_attend(s_q, Q_all, T)                    # (B, Dp)

        # One lane-dense (2B, Dp) store per level (Dp is a multiple of 128).
        out_ref[l] = jnp.concatenate([v_l, q_l], axis=0)


def co_attention_pallas(x_img, x_ques_hierarchy, params, *, mxu_dtype=jnp.bfloat16):
    """Returns (img_feats, quest_feats): lists of (B, D) arrays, one per level."""
    Wv, bv, Wq, bq, wvw, wvb, wqw, wqb = params
    del wvb, wqb   # score biases are no-ops under softmax (shift invariance)

    Qs = jnp.stack(x_ques_hierarchy, axis=0).astype(jnp.float32)       # (L, B, T, D)
    V = x_img.astype(jnp.float32)
    L, B, T, D = Qs.shape
    Nv = V.shape[1]

    # Pad the hidden dim to a lane multiple (128): exact (padded columns stay
    # zero end-to-end), makes every in-kernel reshape layout-preserving, and
    # makes all stores lane-dense.
    Dp = ((D + 127) // 128) * 128
    pad = Dp - D

    def pad_last(a):
        a = a.astype(jnp.float32)
        if pad == 0:
            return a
        return jnp.pad(a, [(0, 0)] * (a.ndim - 1) + [(0, pad)])

    Qs_p = pad_last(Qs)
    V_p = pad_last(V)
    Wv_p = jnp.pad(Wv.astype(jnp.float32), ((0, pad), (0, pad)))
    Wq_p = jnp.pad(Wq.astype(jnp.float32), ((0, pad), (0, pad)))
    bv_p = pad_last(bv.reshape(1, D))
    bq_p = pad_last(bq.reshape(1, D))
    wvw_p = pad_last(wvw.reshape(1, D))
    wqw_p = pad_last(wqw.reshape(1, D))

    # Advisory cost estimate so XLA can overlap this tiny custom call.
    flops = int(2 * B * Nv * Dp * Dp
                + L * (2 * B * T * Nv * Dp          # affinity
                       + 2 * B * T * Dp * Dp        # W_q Q
                       + 4 * B * T * Nv * Dp        # H_v / H_q cross terms
                       + 2 * B * Nv * Dp + 2 * B * T * Dp            # scores
                       + 2 * B * B * Nv * Dp + 2 * B * B * T * Dp))  # weighted sums
    transcendentals = int(L * (B * T * Nv + B * Nv * Dp + B * T * Dp + B * (Nv + T)))
    bytes_accessed = int(4 * (Qs_p.size + V_p.size + Wv_p.size + Wq_p.size
                              + bv_p.size + bq_p.size + wvw_p.size + wqw_p.size
                              + L * 2 * B * Dp))

    kernel = pl.pallas_call(
        functools.partial(_coattn_kernel, mxu_dtype=mxu_dtype),
        out_shape=jax.ShapeDtypeStruct((L, 2 * B, Dp), jnp.float32),
        grid_spec=pltpu.PrefetchScalarGridSpec(
            num_scalar_prefetch=0,
            grid=(1,),   # single program: whole problem is a few hundred KB of VMEM
            in_specs=[
                pl.BlockSpec((L, B, T, Dp), lambda i: (0, 0, 0, 0)),   # Q hierarchy
                pl.BlockSpec((B, Nv, Dp), lambda i: (0, 0, 0)),        # V (image regions)
                pl.BlockSpec((Dp, Dp), lambda i: (0, 0)),              # W_v weight
                pl.BlockSpec((1, Dp), lambda i: (0, 0)),               # b_v
                pl.BlockSpec((Dp, Dp), lambda i: (0, 0)),              # W_q weight
                pl.BlockSpec((1, Dp), lambda i: (0, 0)),               # b_q
                pl.BlockSpec((1, Dp), lambda i: (0, 0)),               # w_v weight
                pl.BlockSpec((1, Dp), lambda i: (0, 0)),               # w_q weight
            ],
            out_specs=pl.BlockSpec((L, 2 * B, Dp), lambda i: (0, 0, 0)),
        ),
        compiler_params=pltpu.CompilerParams(
            dimension_semantics=("arbitrary",)),
        cost_estimate=pl.CostEstimate(flops=flops,
                                      transcendentals=transcendentals,
                                      bytes_accessed=bytes_accessed),
    )
    packed = kernel(Qs_p, V_p, Wv_p, bv_p, Wq_p, bq_p, wvw_p, wqw_p)
    v_out = packed[:, :B, :D]
    q_out = packed[:, B:, :D]
    img_feats = [v_out[l] for l in range(L)]
    quest_feats = [q_out[l] for l in range(L)]
    return img_feats, quest_feats


def co_attention_ref(x_img, x_ques_hierarchy, params):
    """Pure-JAX reference mirroring the PyTorch forward."""
    Wv, bv, Wq, bq, wvw, wvb, wqw, wqb = params
    V = x_img
    img_feats, quest_feats = [], []
    for Q in x_ques_hierarchy:
        C = jnp.tanh(jnp.einsum('btd,bnd->btn', Q, V))
        WvV = V @ Wv.T + bv
        WqQ = Q @ Wq.T + bq
        H_v = jnp.tanh(WvV + jnp.einsum('btn,btd->bnd', C, WqQ))
        H_q = jnp.tanh(WqQ + jnp.einsum('btn,bnd->btd', C, WvV))
        a_v = jax.nn.softmax(H_v @ wvw.T + wvb, axis=1)
        a_q = jax.nn.softmax(H_q @ wqw.T + wqb, axis=1)
        img_feats.append(jnp.sum(a_v * V, axis=1))
        quest_feats.append(jnp.sum(a_q * Q, axis=1))
    return img_feats, quest_feats


if __name__ == "__main__":
    B, Nv, T, D, L = 2, 16, 8, 32, 3   # batch, image regions, tokens, hidden, levels

    key = jax.random.PRNGKey(0)
    keys = jax.random.split(key, 12)

    # PyTorch Linear convention: weight (out, in), bias (out,)
    Wv  = 0.1 * jax.random.normal(keys[0], (D, D), jnp.float32)
    bv  = 0.1 * jax.random.normal(keys[1], (1, D), jnp.float32)
    Wq  = 0.1 * jax.random.normal(keys[2], (D, D), jnp.float32)
    bq  = 0.1 * jax.random.normal(keys[3], (1, D), jnp.float32)
    wvw = 0.1 * jax.random.normal(keys[4], (1, D), jnp.float32)
    wvb = 0.1 * jax.random.normal(keys[5], (1, 1), jnp.float32)
    wqw = 0.1 * jax.random.normal(keys[6], (1, D), jnp.float32)
    wqb = 0.1 * jax.random.normal(keys[7], (1, 1), jnp.float32)
    params = (Wv, bv, Wq, bq, wvw, wvb, wqw, wqb)

    x_img = jax.random.normal(keys[8], (B, Nv, D), jnp.float32)
    x_ques_hierarchy = [jax.random.normal(keys[9 + i], (B, T, D), jnp.float32)
                        for i in range(L)]

    img_ref, quest_ref = co_attention_ref(x_img, x_ques_hierarchy, params)

    # ---- Exact path (f32 MXU operands) ----
    img_f32, quest_f32 = co_attention_pallas(x_img, x_ques_hierarchy, params,
                                             mxu_dtype=jnp.float32)
    jax.block_until_ready((img_f32, quest_f32))
    for a, b in zip(img_f32, img_ref):
        np.testing.assert_allclose(np.asarray(a), np.asarray(b), atol=5e-3, rtol=5e-3)
    for a, b in zip(quest_f32, quest_ref):
        np.testing.assert_allclose(np.asarray(a), np.asarray(b), atol=5e-3, rtol=5e-3)

    # ---- Fast path (bf16 MXU operands, f32 accumulation; v6e/v7x feedback) ----
    img_bf, quest_bf = co_attention_pallas(x_img, x_ques_hierarchy, params,
                                           mxu_dtype=jnp.bfloat16)
    jax.block_until_ready((img_bf, quest_bf))
    for a, b in zip(img_bf, img_ref):
        np.testing.assert_allclose(np.asarray(a), np.asarray(b), atol=2.5e-2, rtol=2.5e-2)
    for a, b in zip(quest_bf, quest_ref):
        np.testing.assert_allclose(np.asarray(a), np.asarray(b), atol=2.5e-2, rtol=2.5e-2)

    print("KERNEL_OK")
</pallas_src>

<mosaic_0001>
module attributes {stable_mosaic.version = 11 : i64} {
  func.func @_coattn_kernel(%arg0: i32, %arg1: memref<3x2x8x128xf32, #tpu.memory_space<vmem>>, %arg2: memref<2x16x128xf32, #tpu.memory_space<vmem>>, %arg3: memref<128x128xf32, #tpu.memory_space<vmem>>, %arg4: memref<1x128xf32, #tpu.memory_space<vmem>>, %arg5: memref<128x128xf32, #tpu.memory_space<vmem>>, %arg6: memref<1x128xf32, #tpu.memory_space<vmem>>, %arg7: memref<1x128xf32, #tpu.memory_space<vmem>>, %arg8: memref<1x128xf32, #tpu.memory_space<vmem>>, %arg9: memref<3x4x128xf32, #tpu.memory_space<vmem>>) attributes {dimension_semantics = [#tpu.dimension_semantics<arbitrary>], iteration_bounds = array<i64: 1>, scalar_prefetch = 0 : i64, scratch_operands = 0 : i64, tpu.core_type = #tpu.core_type<tc>, window_params = [{pipeline_mode = #tpu.pipeline_mode<synchronous>, transform_indices = @transform_0, window_bounds = array<i64: 3, 2, 8, 128>}, {pipeline_mode = #tpu.pipeline_mode<synchronous>, transform_indices = @transform_1, window_bounds = array<i64: 2, 16, 128>}, {pipeline_mode = #tpu.pipeline_mode<synchronous>, transform_indices = @transform_2, window_bounds = array<i64: 128, 128>}, {pipeline_mode = #tpu.pipeline_mode<synchronous>, transform_indices = @transform_3, window_bounds = array<i64: 1, 128>}, {pipeline_mode = #tpu.pipeline_mode<synchronous>, transform_indices = @transform_4, window_bounds = array<i64: 128, 128>}, {pipeline_mode = #tpu.pipeline_mode<synchronous>, transform_indices = @transform_5, window_bounds = array<i64: 1, 128>}, {pipeline_mode = #tpu.pipeline_mode<synchronous>, transform_indices = @transform_6, window_bounds = array<i64: 1, 128>}, {pipeline_mode = #tpu.pipeline_mode<synchronous>, transform_indices = @transform_7, window_bounds = array<i64: 1, 128>}, {pipeline_mode = #tpu.pipeline_mode<synchronous>, transform_indices = @transform_8, window_bounds = array<i64: 3, 4, 128>}]} {
    %c0 = arith.constant 0 : index
    %c0_0 = arith.constant 0 : index
    %c0_1 = arith.constant 0 : index
    %0 = vector.load %arg2[%c0, %c0_0, %c0_1] : memref<2x16x128xf32, #tpu.memory_space<vmem>>, vector<2x16x128xf32>
    %1 = vector.shape_cast %0 : vector<2x16x128xf32> to vector<32x128xf32>
    %c0_2 = arith.constant 0 : index
    %c0_3 = arith.constant 0 : index
    %2 = vector.load %arg3[%c0_2, %c0_3] : memref<128x128xf32, #tpu.memory_space<vmem>>, vector<128x128xf32>
    %c0_4 = arith.constant 0 : index
    %c0_5 = arith.constant 0 : index
    %3 = vector.load %arg5[%c0_4, %c0_5] : memref<128x128xf32, #tpu.memory_space<vmem>>, vector<128x128xf32>
    %c0_6 = arith.constant 0 : index
    %c0_7 = arith.constant 0 : index
    %4 = vector.load %arg4[%c0_6, %c0_7] : memref<1x128xf32, #tpu.memory_space<vmem>>, vector<1x128xf32>
    %c0_8 = arith.constant 0 : index
    %c0_9 = arith.constant 0 : index
    %5 = vector.load %arg6[%c0_8, %c0_9] : memref<1x128xf32, #tpu.memory_space<vmem>>, vector<1x128xf32>
    %c0_10 = arith.constant 0 : index
    %c0_11 = arith.constant 0 : index
    %6 = vector.load %arg7[%c0_10, %c0_11] : memref<1x128xf32, #tpu.memory_space<vmem>>, vector<1x128xf32>
    %c0_12 = arith.constant 0 : index
    %c0_13 = arith.constant 0 : index
    %7 = vector.load %arg8[%c0_12, %c0_13] : memref<1x128xf32, #tpu.memory_space<vmem>>, vector<1x128xf32>
    %cst = arith.constant dense<0.000000e+00> : vector<32x128xf32>
    %8 = tpu.matmul %1, %2, %cst {dimension_numbers = #tpu.dot_dimension_numbers<[1], [1], [0], [0], [0, 0, 1, 0], [], []>} : vector<32x128xf32>, vector<128x128xf32>, vector<32x128xf32> -> vector<32x128xf32>
    %9 = vector.broadcast %4 : vector<1x128xf32> to vector<32x128xf32>
    %10 = arith.addf %8, %9 : vector<32x128xf32>
    %11 = vector.shape_cast %10 : vector<32x128xf32> to vector<2x16x128xf32>
    %c0_14 = arith.constant 0 : index
    %c0_15 = arith.constant 0 : index
    %c0_16 = arith.constant 0 : index
    %c0_17 = arith.constant 0 : index
    %12 = vector.load %arg1[%c0_14, %c0_15, %c0_16, %c0_17] : memref<3x2x8x128xf32, #tpu.memory_space<vmem>>, vector<1x2x8x128xf32>
    %13 = vector.shape_cast %12 : vector<1x2x8x128xf32> to vector<2x8x128xf32>
    %14 = vector.shape_cast %13 : vector<2x8x128xf32> to vector<16x128xf32>
    "tpu.trace_start"() <{level = 10 : i32, message = "btd,bnd->btn"}> : () -> ()
    %cst_18 = arith.constant dense<0.000000e+00> : vector<2x8x16xf32>
    %15 = tpu.matmul %13, %0, %cst_18 {dimension_numbers = #tpu.dot_dimension_numbers<[2], [2], [1], [1], [0, 0, 0, 1, 1, 1], [0], [0]>} : vector<2x8x128xf32>, vector<2x16x128xf32>, vector<2x8x16xf32> -> vector<2x8x16xf32>
    "tpu.trace_stop"() : () -> ()
    %16 = math.tanh %15 : vector<2x8x16xf32>
    %cst_19 = arith.constant dense<0.000000e+00> : vector<16x128xf32>
    %17 = tpu.matmul %14, %3, %cst_19 {dimension_numbers = #tpu.dot_dimension_numbers<[1], [1], [0], [0], [0, 0, 1, 0], [], []>} : vector<16x128xf32>, vector<128x128xf32>, vector<16x128xf32> -> vector<16x128xf32>
    %18 = vector.broadcast %5 : vector<1x128xf32> to vector<16x128xf32>
    %19 = arith.addf %17, %18 : vector<16x128xf32>
    %20 = vector.shape_cast %19 : vector<16x128xf32> to vector<2x8x128xf32>
    "tpu.trace_start"() <{level = 10 : i32, message = "btn,btd->bnd"}> : () -> ()
    %cst_20 = arith.constant dense<0.000000e+00> : vector<2x16x128xf32>
    %21 = tpu.matmul %16, %20, %cst_20 {dimension_numbers = #tpu.dot_dimension_numbers<[1], [1], [2], [2], [0, 0, 0, 2, 1, 2], [0], [0]>} : vector<2x8x16xf32>, vector<2x8x128xf32>, vector<2x16x128xf32> -> vector<2x16x128xf32>
    "tpu.trace_stop"() : () -> ()
    %22 = arith.addf %11, %21 : vector<2x16x128xf32>
    %23 = math.tanh %22 : vector<2x16x128xf32>
    "tpu.trace_start"() <{level = 10 : i32, message = "btn,bnd->btd"}> : () -> ()
    %cst_21 = arith.constant dense<0.000000e+00> : vector<2x8x128xf32>
    %24 = tpu.matmul %16, %11, %cst_21 {dimension_numbers = #tpu.dot_dimension_numbers<[2], [1], [1], [2], [0, 0, 0, 1, 1, 2], [0], [0]>} : vector<2x8x16xf32>, vector<2x16x128xf32>, vector<2x8x128xf32> -> vector<2x8x128xf32>
    "tpu.trace_stop"() : () -> ()
    %25 = arith.addf %20, %24 : vector<2x8x128xf32>
    %26 = math.tanh %25 : vector<2x8x128xf32>
    %27 = vector.shape_cast %23 : vector<2x16x128xf32> to vector<32x128xf32>
    %cst_22 = arith.constant dense<0.000000e+00> : vector<1x32xf32>
    %28 = tpu.matmul %6, %27, %cst_22 {dimension_numbers = #tpu.dot_dimension_numbers<[1], [1], [0], [0], [0, 0, 1, 0], [], []>} : vector<1x128xf32>, vector<32x128xf32>, vector<1x32xf32> -> vector<1x32xf32>
    %29 = vector.shape_cast %26 : vector<2x8x128xf32> to vector<16x128xf32>
    %cst_23 = arith.constant dense<0.000000e+00> : vector<1x16xf32>
    %30 = tpu.matmul %7, %29, %cst_23 {dimension_numbers = #tpu.dot_dimension_numbers<[1], [1], [0], [0], [0, 0, 1, 0], [], []>} : vector<1x128xf32>, vector<16x128xf32>, vector<1x16xf32> -> vector<1x16xf32>
    %cst_24 = arith.constant dense<0xFF800000> : vector<1xf32>
    %31 = vector.multi_reduction <maximumf>, %28, %cst_24 [1] : vector<1x32xf32> to vector<1xf32>
    %32 = vector.shape_cast %31 : vector<1xf32> to vector<1x1xf32>
    %33 = vector.broadcast %32 : vector<1x1xf32> to vector<1x32xf32>
    %34 = arith.subf %28, %33 : vector<1x32xf32>
    %35 = math.exp %34 : vector<1x32xf32>
    %36 = vector.shape_cast %35 : vector<1x32xf32> to vector<1x32xf32>
    %37 = vector.broadcast %36 : vector<1x32xf32> to vector<2x32xf32>
    %38 = tpu.iota {dimensions = array<i32: 1>} : vector<2x32xi32>
    %39 = tpu.iota {dimensions = array<i32: 0>} : vector<2x32xi32>
    %c16_i32 = arith.constant 16 : i32
    %40 = vector.broadcast %c16_i32 : i32 to vector<2x32xi32>
    %41 = arith.muli %39, %40 : vector<2x32xi32>
    %42 = arith.cmpi sge, %38, %41 : vector<2x32xi32>
    %c16_i32_25 = arith.constant 16 : i32
    %43 = vector.broadcast %c16_i32_25 : i32 to vector<2x32xi32>
    %44 = arith.addi %41, %43 : vector<2x32xi32>
    %45 = arith.cmpi slt, %38, %44 : vector<2x32xi32>
    %46 = arith.andi %42, %45 : vector<2x32xi1>
    %cst_26 = arith.constant 0.000000e+00 : f32
    %47 = vector.broadcast %cst_26 : f32 to vector<2x32xf32>
    %48 = arith.select %46, %37, %47 : vector<2x32xi1>, vector<2x32xf32>
    %cst_27 = arith.constant dense<0.000000e+00> : vector<2xf32>
    %49 = vector.multi_reduction <add>, %48, %cst_27 [1] : vector<2x32xf32> to vector<2xf32>
    %50 = vector.shape_cast %49 : vector<2xf32> to vector<2x1xf32>
    %cst_28 = arith.constant dense<0.000000e+00> : vector<2x128xf32>
    %51 = tpu.matmul %48, %1, %cst_28 {dimension_numbers = #tpu.dot_dimension_numbers<[1], [0], [0], [1], [0, 0, 1, 1], [], []>} : vector<2x32xf32>, vector<32x128xf32>, vector<2x128xf32> -> vector<2x128xf32>
    %52 = tpu.reciprocal %50 {approx = true} : vector<2x1xf32> -> vector<2x1xf32>
    %53 = vector.broadcast %52 : vector<2x1xf32> to vector<2x128xf32>
    %54 = arith.mulf %51, %53 : vector<2x128xf32>
    %cst_29 = arith.constant dense<0xFF800000> : vector<1xf32>
    %55 = vector.multi_reduction <maximumf>, %30, %cst_29 [1] : vector<1x16xf32> to vector<1xf32>
    %56 = vector.shape_cast %55 : vector<1xf32> to vector<1x1xf32>
    %57 = vector.broadcast %56 : vector<1x1xf32> to vector<1x16xf32>
    %58 = arith.subf %30, %57 : vector<1x16xf32>
    %59 = math.exp %58 : vector<1x16xf32>
    %60 = vector.shape_cast %59 : vector<1x16xf32> to vector<1x16xf32>
    %61 = vector.broadcast %60 : vector<1x16xf32> to vector<2x16xf32>
    %62 = tpu.iota {dimensions = array<i32: 1>} : vector<2x16xi32>
    %63 = tpu.iota {dimensions = array<i32: 0>} : vector<2x16xi32>
    %c8_i32 = arith.constant 8 : i32
    %64 = vector.broadcast %c8_i32 : i32 to vector<2x16xi32>
    %65 = arith.muli %63, %64 : vector<2x16xi32>
    %66 = arith.cmpi sge, %62, %65 : vector<2x16xi32>
    %c8_i32_30 = arith.constant 8 : i32
    %67 = vector.broadcast %c8_i32_30 : i32 to vector<2x16xi32>
    %68 = arith.addi %65, %67 : vector<2x16xi32>
    %69 = arith.cmpi slt, %62, %68 : vector<2x16xi32>
    %70 = arith.andi %66, %69 : vector<2x16xi1>
    %cst_31 = arith.constant 0.000000e+00 : f32
    %71 = vector.broadcast %cst_31 : f32 to vector<2x16xf32>
    %72 = arith.select %70, %61, %71 : vector<2x16xi1>, vector<2x16xf32>
    %cst_32 = arith.constant dense<0.000000e+00> : vector<2xf32>
    %73 = vector.multi_reduction <add>, %72, %cst_32 [1] : vector<2x16xf32> to vector<2xf32>
    %74 = vector.shape_cast %73 : vector<2xf32> to vector<2x1xf32>
    %cst_33 = arith.constant dense<0.000000e+00> : vector<2x128xf32>
    %75 = tpu.matmul %72, %14, %cst_33 {dimension_numbers = #tpu.dot_dimension_numbers<[1], [0], [0], [1], [0, 0, 1, 1], [], []>} : vector<2x16xf32>, vector<16x128xf32>, vector<2x128xf32> -> vector<2x128xf32>
    %76 = tpu.reciprocal %74 {approx = true} : vector<2x1xf32> -> vector<2x1xf32>
    %77 = vector.broadcast %76 : vector<2x1xf32> to vector<2x128xf32>
    %78 = arith.mulf %75, %77 : vector<2x128xf32>
    %79 = tpu.concatenate %54, %78 in 0 : vector<2x128xf32>, vector<2x128xf32> -> vector<4x128xf32>
    %c0_34 = arith.constant 0 : index
    %c0_35 = arith.constant 0 : index
    %c0_36 = arith.constant 0 : index
    %80 = vector.load %arg9[%c0_34, %c0_35, %c0_36] : memref<3x4x128xf32, #tpu.memory_space<vmem>>, vector<1x4x128xf32>
    %81 = vector.shape_cast %80 : vector<1x4x128xf32> to vector<4x128xf32>
    %82 = vector.shape_cast %79 : vector<4x128xf32> to vector<1x4x128xf32>
    tpu.vector_store %arg9[%c0_34, %c0_35, %c0_36], %82 {strides = array<i32>} : memref<3x4x128xf32, #tpu.memory_space<vmem>>, vector<1x4x128xf32>,
    %c1 = arith.constant 1 : index
    %c0_37 = arith.constant 0 : index
    %c0_38 = arith.constant 0 : index
    %c0_39 = arith.constant 0 : index
    %83 = vector.load %arg1[%c1, %c0_37, %c0_38, %c0_39] : memref<3x2x8x128xf32, #tpu.memory_space<vmem>>, vector<1x2x8x128xf32>
    %84 = vector.shape_cast %83 : vector<1x2x8x128xf32> to vector<2x8x128xf32>
    %85 = vector.shape_cast %84 : vector<2x8x128xf32> to vector<16x128xf32>
    "tpu.trace_start"() <{level = 10 : i32, message = "btd,bnd->btn"}> : () -> ()
    %cst_40 = arith.constant dense<0.000000e+00> : vector<2x8x16xf32>
    %86 = tpu.matmul %84, %0, %cst_40 {dimension_numbers = #tpu.dot_dimension_numbers<[2], [2], [1], [1], [0, 0, 0, 1, 1, 1], [0], [0]>} : vector<2x8x128xf32>, vector<2x16x128xf32>, vector<2x8x16xf32> -> vector<2x8x16xf32>
    "tpu.trace_stop"() : () -> ()
    %87 = math.tanh %86 : vector<2x8x16xf32>
    %cst_41 = arith.constant dense<0.000000e+00> : vector<16x128xf32>
    %88 = tpu.matmul %85, %3, %cst_41 {dimension_numbers = #tpu.dot_dimension_numbers<[1], [1], [0], [0], [0, 0, 1, 0], [], []>} : vector<16x128xf32>, vector<128x128xf32>, vector<16x128xf32> -> vector<16x128xf32>
    %89 = vector.broadcast %5 : vector<1x128xf32> to vector<16x128xf32>
    %90 = arith.addf %88, %89 : vector<16x128xf32>
    %91 = vector.shape_cast %90 : vector<16x128xf32> to vector<2x8x128xf32>
    "tpu.trace_start"() <{level = 10 : i32, message = "btn,btd->bnd"}> : () -> ()
    %cst_42 = arith.constant dense<0.000000e+00> : vector<2x16x128xf32>
    %92 = tpu.matmul %87, %91, %cst_42 {dimension_numbers = #tpu.dot_dimension_numbers<[1], [1], [2], [2], [0, 0, 0, 2, 1, 2], [0], [0]>} : vector<2x8x16xf32>, vector<2x8x128xf32>, vector<2x16x128xf32> -> vector<2x16x128xf32>
    "tpu.trace_stop"() : () -> ()
    %93 = arith.addf %11, %92 : vector<2x16x128xf32>
    %94 = math.tanh %93 : vector<2x16x128xf32>
    "tpu.trace_start"() <{level = 10 : i32, message = "btn,bnd->btd"}> : () -> ()
    %cst_43 = arith.constant dense<0.000000e+00> : vector<2x8x128xf32>
    %95 = tpu.matmul %87, %11, %cst_43 {dimension_numbers = #tpu.dot_dimension_numbers<[2], [1], [1], [2], [0, 0, 0, 1, 1, 2], [0], [0]>} : vector<2x8x16xf32>, vector<2x16x128xf32>, vector<2x8x128xf32> -> vector<2x8x128xf32>
    "tpu.trace_stop"() : () -> ()
    %96 = arith.addf %91, %95 : vector<2x8x128xf32>
    %97 = math.tanh %96 : vector<2x8x128xf32>
    %98 = vector.shape_cast %94 : vector<2x16x128xf32> to vector<32x128xf32>
    %cst_44 = arith.constant dense<0.000000e+00> : vector<1x32xf32>
    %99 = tpu.matmul %6, %98, %cst_44 {dimension_numbers = #tpu.dot_dimension_numbers<[1], [1], [0], [0], [0, 0, 1, 0], [], []>} : vector<1x128xf32>, vector<32x128xf32>, vector<1x32xf32> -> vector<1x32xf32>
    %100 = vector.shape_cast %97 : vector<2x8x128xf32> to vector<16x128xf32>
    %cst_45 = arith.constant dense<0.000000e+00> : vector<1x16xf32>
    %101 = tpu.matmul %7, %100, %cst_45 {dimension_numbers = #tpu.dot_dimension_numbers<[1], [1], [0], [0], [0, 0, 1, 0], [], []>} : vector<1x128xf32>, vector<16x128xf32>, vector<1x16xf32> -> vector<1x16xf32>
    %cst_46 = arith.constant dense<0xFF800000> : vector<1xf32>
    %102 = vector.multi_reduction <maximumf>, %99, %cst_46 [1] : vector<1x32xf32> to vector<1xf32>
    %103 = vector.shape_cast %102 : vector<1xf32> to vector<1x1xf32>
    %104 = vector.broadcast %103 : vector<1x1xf32> to vector<1x32xf32>
    %105 = arith.subf %99, %104 : vector<1x32xf32>
    %106 = math.exp %105 : vector<1x32xf32>
    %107 = vector.shape_cast %106 : vector<1x32xf32> to vector<1x32xf32>
    %108 = vector.broadcast %107 : vector<1x32xf32> to vector<2x32xf32>
    %109 = tpu.iota {dimensions = array<i32: 1>} : vector<2x32xi32>
    %110 = tpu.iota {dimensions = array<i32: 0>} : vector<2x32xi32>
    %c16_i32_47 = arith.constant 16 : i32
    %111 = vector.broadcast %c16_i32_47 : i32 to vector<2x32xi32>
    %112 = arith.muli %110, %111 : vector<2x32xi32>
    %113 = arith.cmpi sge, %109, %112 : vector<2x32xi32>
    %c16_i32_48 = arith.constant 16 : i32
    %114 = vector.broadcast %c16_i32_48 : i32 to vector<2x32xi32>
    %115 = arith.addi %112, %114 : vector<2x32xi32>
    %116 = arith.cmpi slt, %109, %115 : vector<2x32xi32>
    %117 = arith.andi %113, %116 : vector<2x32xi1>
    %cst_49 = arith.constant 0.000000e+00 : f32
    %118 = vector.broadcast %cst_49 : f32 to vector<2x32xf32>
    %119 = arith.select %117, %108, %118 : vector<2x32xi1>, vector<2x32xf32>
    %cst_50 = arith.constant dense<0.000000e+00> : vector<2xf32>
    %120 = vector.multi_reduction <add>, %119, %cst_50 [1] : vector<2x32xf32> to vector<2xf32>
    %121 = vector.shape_cast %120 : vector<2xf32> to vector<2x1xf32>
    %cst_51 = arith.constant dense<0.000000e+00> : vector<2x128xf32>
    %122 = tpu.matmul %119, %1, %cst_51 {dimension_numbers = #tpu.dot_dimension_numbers<[1], [0], [0], [1], [0, 0, 1, 1], [], []>} : vector<2x32xf32>, vector<32x128xf32>, vector<2x128xf32> -> vector<2x128xf32>
    %123 = tpu.reciprocal %121 {approx = true} : vector<2x1xf32> -> vector<2x1xf32>
    %124 = vector.broadcast %123 : vector<2x1xf32> to vector<2x128xf32>
    %125 = arith.mulf %122, %124 : vector<2x128xf32>
    %cst_52 = arith.constant dense<0xFF800000> : vector<1xf32>
    %126 = vector.multi_reduction <maximumf>, %101, %cst_52 [1] : vector<1x16xf32> to vector<1xf32>
    %127 = vector.shape_cast %126 : vector<1xf32> to vector<1x1xf32>
    %128 = vector.broadcast %127 : vector<1x1xf32> to vector<1x16xf32>
    %129 = arith.subf %101, %128 : vector<1x16xf32>
    %130 = math.exp %129 : vector<1x16xf32>
    %131 = vector.shape_cast %130 : vector<1x16xf32> to vector<1x16xf32>
    %132 = vector.broadcast %131 : vector<1x16xf32> to vector<2x16xf32>
    %133 = tpu.iota {dimensions = array<i32: 1>} : vector<2x16xi32>
    %134 = tpu.iota {dimensions = array<i32: 0>} : vector<2x16xi32>
    %c8_i32_53 = arith.constant 8 : i32
    %135 = vector.broadcast %c8_i32_53 : i32 to vector<2x16xi32>
    %136 = arith.muli %134, %135 : vector<2x16xi32>
    %137 = arith.cmpi sge, %133, %136 : vector<2x16xi32>
    %c8_i32_54 = arith.constant 8 : i32
    %138 = vector.broadcast %c8_i32_54 : i32 to vector<2x16xi32>
    %139 = arith.addi %136, %138 : vector<2x16xi32>
    %140 = arith.cmpi slt, %133, %139 : vector<2x16xi32>
    %141 = arith.andi %137, %140 : vector<2x16xi1>
    %cst_55 = arith.constant 0.000000e+00 : f32
    %142 = vector.broadcast %cst_55 : f32 to vector<2x16xf32>
    %143 = arith.select %141, %132, %142 : vector<2x16xi1>, vector<2x16xf32>
    %cst_56 = arith.constant dense<0.000000e+00> : vector<2xf32>
    %144 = vector.multi_reduction <add>, %143, %cst_56 [1] : vector<2x16xf32> to vector<2xf32>
    %145 = vector.shape_cast %144 : vector<2xf32> to vector<2x1xf32>
    %cst_57 = arith.constant dense<0.000000e+00> : vector<2x128xf32>
    %146 = tpu.matmul %143, %85, %cst_57 {dimension_numbers = #tpu.dot_dimension_numbers<[1], [0], [0], [1], [0, 0, 1, 1], [], []>} : vector<2x16xf32>, vector<16x128xf32>, vector<2x128xf32> -> vector<2x128xf32>
    %147 = tpu.reciprocal %145 {approx = true} : vector<2x1xf32> -> vector<2x1xf32>
    %148 = vector.broadcast %147 : vector<2x1xf32> to vector<2x128xf32>
    %149 = arith.mulf %146, %148 : vector<2x128xf32>
    %150 = tpu.concatenate %125, %149 in 0 : vector<2x128xf32>, vector<2x128xf32> -> vector<4x128xf32>
    %c1_58 = arith.constant 1 : index
    %c0_59 = arith.constant 0 : index
    %c0_60 = arith.constant 0 : index
    %151 = vector.load %arg9[%c1_58, %c0_59, %c0_60] : memref<3x4x128xf32, #tpu.memory_space<vmem>>, vector<1x4x128xf32>
    %152 = vector.shape_cast %151 : vector<1x4x128xf32> to vector<4x128xf32>
    %153 = vector.shape_cast %150 : vector<4x128xf32> to vector<1x4x128xf32>
    tpu.vector_store %arg9[%c1_58, %c0_59, %c0_60], %153 {strides = array<i32>} : memref<3x4x128xf32, #tpu.memory_space<vmem>>, vector<1x4x128xf32>,
    %c2 = arith.constant 2 : index
    %c0_61 = arith.constant 0 : index
    %c0_62 = arith.constant 0 : index
    %c0_63 = arith.constant 0 : index
    %154 = vector.load %arg1[%c2, %c0_61, %c0_62, %c0_63] : memref<3x2x8x128xf32, #tpu.memory_space<vmem>>, vector<1x2x8x128xf32>
    %155 = vector.shape_cast %154 : vector<1x2x8x128xf32> to vector<2x8x128xf32>
    %156 = vector.shape_cast %155 : vector<2x8x128xf32> to vector<16x128xf32>
    "tpu.trace_start"() <{level = 10 : i32, message = "btd,bnd->btn"}> : () -> ()
    %cst_64 = arith.constant dense<0.000000e+00> : vector<2x8x16xf32>
    %157 = tpu.matmul %155, %0, %cst_64 {dimension_numbers = #tpu.dot_dimension_numbers<[2], [2], [1], [1], [0, 0, 0, 1, 1, 1], [0], [0]>} : vector<2x8x128xf32>, vector<2x16x128xf32>, vector<2x8x16xf32> -> vector<2x8x16xf32>
    "tpu.trace_stop"() : () -> ()
    %158 = math.tanh %157 : vector<2x8x16xf32>
    %cst_65 = arith.constant dense<0.000000e+00> : vector<16x128xf32>
    %159 = tpu.matmul %156, %3, %cst_65 {dimension_numbers = #tpu.dot_dimension_numbers<[1], [1], [0], [0], [0, 0, 1, 0], [], []>} : vector<16x128xf32>, vector<128x128xf32>, vector<16x128xf32> -> vector<16x128xf32>
    %160 = vector.broadcast %5 : vector<1x128xf32> to vector<16x128xf32>
    %161 = arith.addf %159, %160 : vector<16x128xf32>
    %162 = vector.shape_cast %161 : vector<16x128xf32> to vector<2x8x128xf32>
    "tpu.trace_start"() <{level = 10 : i32, message = "btn,btd->bnd"}> : () -> ()
    %cst_66 = arith.constant dense<0.000000e+00> : vector<2x16x128xf32>
    %163 = tpu.matmul %158, %162, %cst_66 {dimension_numbers = #tpu.dot_dimension_numbers<[1], [1], [2], [2], [0, 0, 0, 2, 1, 2], [0], [0]>} : vector<2x8x16xf32>, vector<2x8x128xf32>, vector<2x16x128xf32> -> vector<2x16x128xf32>
    "tpu.trace_stop"() : () -> ()
    %164 = arith.addf %11, %163 : vector<2x16x128xf32>
    %165 = math.tanh %164 : vector<2x16x128xf32>
    "tpu.trace_start"() <{level = 10 : i32, message = "btn,bnd->btd"}> : () -> ()
    %cst_67 = arith.constant dense<0.000000e+00> : vector<2x8x128xf32>
    %166 = tpu.matmul %158, %11, %cst_67 {dimension_numbers = #tpu.dot_dimension_numbers<[2], [1], [1], [2], [0, 0, 0, 1, 1, 2], [0], [0]>} : vector<2x8x16xf32>, vector<2x16x128xf32>, vector<2x8x128xf32> -> vector<2x8x128xf32>
    "tpu.trace_stop"() : () -> ()
    %167 = arith.addf %162, %166 : vector<2x8x128xf32>
    %168 = math.tanh %167 : vector<2x8x128xf32>
    %169 = vector.shape_cast %165 : vector<2x16x128xf32> to vector<32x128xf32>
    %cst_68 = arith.constant dense<0.000000e+00> : vector<1x32xf32>
    %170 = tpu.matmul %6, %169, %cst_68 {dimension_numbers = #tpu.dot_dimension_numbers<[1], [1], [0], [0], [0, 0, 1, 0], [], []>} : vector<1x128xf32>, vector<32x128xf32>, vector<1x32xf32> -> vector<1x32xf32>
    %171 = vector.shape_cast %168 : vector<2x8x128xf32> to vector<16x128xf32>
    %cst_69 = arith.constant dense<0.000000e+00> : vector<1x16xf32>
    %172 = tpu.matmul %7, %171, %cst_69 {dimension_numbers = #tpu.dot_dimension_numbers<[1], [1], [0], [0], [0, 0, 1, 0], [], []>} : vector<1x128xf32>, vector<16x128xf32>, vector<1x16xf32> -> vector<1x16xf32>
    %cst_70 = arith.constant dense<0xFF800000> : vector<1xf32>
    %173 = vector.multi_reduction <maximumf>, %170, %cst_70 [1] : vector<1x32xf32> to vector<1xf32>
    %174 = vector.shape_cast %173 : vector<1xf32> to vector<1x1xf32>
    %175 = vector.broadcast %174 : vector<1x1xf32> to vector<1x32xf32>
    %176 = arith.subf %170, %175 : vector<1x32xf32>
    %177 = math.exp %176 : vector<1x32xf32>
    %178 = vector.shape_cast %177 : vector<1x32xf32> to vector<1x32xf32>
    %179 = vector.broadcast %178 : vector<1x32xf32> to vector<2x32xf32>
    %180 = tpu.iota {dimensions = array<i32: 1>} : vector<2x32xi32>
    %181 = tpu.iota {dimensions = array<i32: 0>} : vector<2x32xi32>
    %c16_i32_71 = arith.constant 16 : i32
    %182 = vector.broadcast %c16_i32_71 : i32 to vector<2x32xi32>
    %183 = arith.muli %181, %182 : vector<2x32xi32>
    %184 = arith.cmpi sge, %180, %183 : vector<2x32xi32>
    %c16_i32_72 = arith.constant 16 : i32
    %185 = vector.broadcast %c16_i32_72 : i32 to vector<2x32xi32>
    %186 = arith.addi %183, %185 : vector<2x32xi32>
    %187 = arith.cmpi slt, %180, %186 : vector<2x32xi32>
    %188 = arith.andi %184, %187 : vector<2x32xi1>
    %cst_73 = arith.constant 0.000000e+00 : f32
    %189 = vector.broadcast %cst_73 : f32 to vector<2x32xf32>
    %190 = arith.select %188, %179, %189 : vector<2x32xi1>, vector<2x32xf32>
    %cst_74 = arith.constant dense<0.000000e+00> : vector<2xf32>
    %191 = vector.multi_reduction <add>, %190, %cst_74 [1] : vector<2x32xf32> to vector<2xf32>
    %192 = vector.shape_cast %191 : vector<2xf32> to vector<2x1xf32>
    %cst_75 = arith.constant dense<0.000000e+00> : vector<2x128xf32>
    %193 = tpu.matmul %190, %1, %cst_75 {dimension_numbers = #tpu.dot_dimension_numbers<[1], [0], [0], [1], [0, 0, 1, 1], [], []>} : vector<2x32xf32>, vector<32x128xf32>, vector<2x128xf32> -> vector<2x128xf32>
    %194 = tpu.reciprocal %192 {approx = true} : vector<2x1xf32> -> vector<2x1xf32>
    %195 = vector.broadcast %194 : vector<2x1xf32> to vector<2x128xf32>
    %196 = arith.mulf %193, %195 : vector<2x128xf32>
    %cst_76 = arith.constant dense<0xFF800000> : vector<1xf32>
    %197 = vector.multi_reduction <maximumf>, %172, %cst_76 [1] : vector<1x16xf32> to vector<1xf32>
    %198 = vector.shape_cast %197 : vector<1xf32> to vector<1x1xf32>
    %199 = vector.broadcast %198 : vector<1x1xf32> to vector<1x16xf32>
    %200 = arith.subf %172, %199 : vector<1x16xf32>
    %201 = math.exp %200 : vector<1x16xf32>
    %202 = vector.shape_cast %201 : vector<1x16xf32> to vector<1x16xf32>
    %203 = vector.broadcast %202 : vector<1x16xf32> to vector<2x16xf32>
    %204 = tpu.iota {dimensions = array<i32: 1>} : vector<2x16xi32>
    %205 = tpu.iota {dimensions = array<i32: 0>} : vector<2x16xi32>
    %c8_i32_77 = arith.constant 8 : i32
    %206 = vector.broadcast %c8_i32_77 : i32 to vector<2x16xi32>
    %207 = arith.muli %205, %206 : vector<2x16xi32>
    %208 = arith.cmpi sge, %204, %207 : vector<2x16xi32>
    %c8_i32_78 = arith.constant 8 : i32
    %209 = vector.broadcast %c8_i32_78 : i32 to vector<2x16xi32>
    %210 = arith.addi %207, %209 : vector<2x16xi32>
    %211 = arith.cmpi slt, %204, %210 : vector<2x16xi32>
    %212 = arith.andi %208, %211 : vector<2x16xi1>
    %cst_79 = arith.constant 0.000000e+00 : f32
    %213 = vector.broadcast %cst_79 : f32 to vector<2x16xf32>
    %214 = arith.select %212, %203, %213 : vector<2x16xi1>, vector<2x16xf32>
    %cst_80 = arith.constant dense<0.000000e+00> : vector<2xf32>
    %215 = vector.multi_reduction <add>, %214, %cst_80 [1] : vector<2x16xf32> to vector<2xf32>
    %216 = vector.shape_cast %215 : vector<2xf32> to vector<2x1xf32>
    %cst_81 = arith.constant dense<0.000000e+00> : vector<2x128xf32>
    %217 = tpu.matmul %214, %156, %cst_81 {dimension_numbers = #tpu.dot_dimension_numbers<[1], [0], [0], [1], [0, 0, 1, 1], [], []>} : vector<2x16xf32>, vector<16x128xf32>, vector<2x128xf32> -> vector<2x128xf32>
    %218 = tpu.reciprocal %216 {approx = true} : vector<2x1xf32> -> vector<2x1xf32>
    %219 = vector.broadcast %218 : vector<2x1xf32> to vector<2x128xf32>
    %220 = arith.mulf %217, %219 : vector<2x128xf32>
    %221 = tpu.concatenate %196, %220 in 0 : vector<2x128xf32>, vector<2x128xf32> -> vector<4x128xf32>
    %c2_82 = arith.constant 2 : index
    %c0_83 = arith.constant 0 : index
    %c0_84 = arith.constant 0 : index
    %222 = vector.load %arg9[%c2_82, %c0_83, %c0_84] : memref<3x4x128xf32, #tpu.memory_space<vmem>>, vector<1x4x128xf32>
    %223 = vector.shape_cast %222 : vector<1x4x128xf32> to vector<4x128xf32>
    %224 = vector.shape_cast %221 : vector<4x128xf32> to vector<1x4x128xf32>
    tpu.vector_store %arg9[%c2_82, %c0_83, %c0_84], %224 {strides = array<i32>} : memref<3x4x128xf32, #tpu.memory_space<vmem>>, vector<1x4x128xf32>,
    return
  }
  func.func @transform_0(%arg0: i32) -> (i32, i32, i32, i32) {
    %c0_i32 = arith.constant 0 : i32
    %c0_i32_0 = arith.constant 0 : i32
    %c0_i32_1 = arith.constant 0 : i32
    %c0_i32_2 = arith.constant 0 : i32
    %c0_i32_3 = arith.constant 0 : i32
    return %c0_i32, %c0_i32_0, %c0_i32_1, %c0_i32_2 : i32, i32, i32, i32
  }
  func.func @transform_1(%arg0: i32) -> (i32, i32, i32) {
    %c0_i32 = arith.constant 0 : i32
    %c0_i32_0 = arith.constant 0 : i32
    %c0_i32_1 = arith.constant 0 : i32
    %c0_i32_2 = arith.constant 0 : i32
    return %c0_i32, %c0_i32_0, %c0_i32_1 : i32, i32, i32
  }
  func.func @transform_2(%arg0: i32) -> (i32, i32) {
    %c0_i32 = arith.constant 0 : i32
    %c0_i32_0 = arith.constant 0 : i32
    %c0_i32_1 = arith.constant 0 : i32
    return %c0_i32, %c0_i32_0 : i32, i32
  }
  func.func @transform_3(%arg0: i32) -> (i32, i32) {
    %c0_i32 = arith.constant 0 : i32
    %c0_i32_0 = arith.constant 0 : i32
    %c0_i32_1 = arith.constant 0 : i32
    return %c0_i32, %c0_i32_0 : i32, i32
  }
  func.func @transform_4(%arg0: i32) -> (i32, i32) {
    %c0_i32 = arith.constant 0 : i32
    %c0_i32_0 = arith.constant 0 : i32
    %c0_i32_1 = arith.constant 0 : i32
    return %c0_i32, %c0_i32_0 : i32, i32
  }
  func.func @transform_5(%arg0: i32) -> (i32, i32) {
    %c0_i32 = arith.constant 0 : i32
    %c0_i32_0 = arith.constant 0 : i32
    %c0_i32_1 = arith.constant 0 : i32
    return %c0_i32, %c0_i32_0 : i32, i32
  }
  func.func @transform_6(%arg0: i32) -> (i32, i32) {
    %c0_i32 = arith.constant 0 : i32
    %c0_i32_0 = arith.constant 0 : i32
    %c0_i32_1 = arith.constant 0 : i32
    return %c0_i32, %c0_i32_0 : i32, i32
  }
  func.func @transform_7(%arg0: i32) -> (i32, i32) {
    %c0_i32 = arith.constant 0 : i32
    %c0_i32_0 = arith.constant 0 : i32
    %c0_i32_1 = arith.constant 0 : i32
    return %c0_i32, %c0_i32_0 : i32, i32
  }
  func.func @transform_8(%arg0: i32) -> (i32, i32, i32) {
    %c0_i32 = arith.constant 0 : i32
    %c0_i32_0 = arith.constant 0 : i32
    %c0_i32_1 = arith.constant 0 : i32
    %c0_i32_2 = arith.constant 0 : i32
    return %c0_i32, %c0_i32_0, %c0_i32_1 : i32, i32, i32
  }
}

</mosaic_0001>

<llo_original>
// kernel: tpu_custom_call.1
$region0: #{tpu_custom_call.1}
  #allocation0 [shape = 'u32[]', space=smem, size = 0x4, offset = 0x4, fixed_abs, tag = 'smem constant byte address 0x4 - core index']
  #allocation1 [shape = 'u32[72,128]{1,0:T(1,128)}', space=vmem, size = 0x9000, scoped, tag = 'internal scratch']
  %s0 = inlined_call_operand.hbm [shape: f32[3,2,8,128], index: 0, kind: input, shape index: {}]
  %s1 = inlined_call_operand.hbm [shape: f32[2,16,128], index: 1, kind: input, shape index: {}]
  %s2 = inlined_call_operand.hbm [shape: f32[128,128], index: 2, kind: input, shape index: {}]
  %s3 = inlined_call_operand.vmem [shape: f32[1,128], index: 3, kind: input, shape index: {}]
  %s4 = inlined_call_operand.hbm [shape: f32[128,128], index: 4, kind: input, shape index: {}]
  %s5 = inlined_call_operand.vmem [shape: f32[1,128], index: 5, kind: input, shape index: {}]
  %s6 = inlined_call_operand.vmem [shape: f32[1,128], index: 6, kind: input, shape index: {}]
  %s7 = inlined_call_operand.vmem [shape: f32[1,128], index: 7, kind: input, shape index: {}]
  %s8 = inlined_call_operand.hbm [shape: f32[3,4,128], index: 8, kind: output, shape index: {}]
  %s9 = sld [smem:[#allocation0]]
  $region58: #{tpu_custom_call.1} parent=0
    _
  %s11 = ssub.s32 1, %s9
  %s12 = scalar_select 0, %s11, %s9
  $region1: #{tpu_custom_call.1} parent=0
    #allocation2 [shape = 'u8[24576]{0}', space=vmem, size = 0x6000, scoped, tag = 'input window, operand 0, single buffered']
    #allocation3 [shape = 's32[1]{0}', space=sflag, size = 0x4, scoped, tag = 'scoped memory for tpu_custom_call.1']
    #allocation4 [shape = 's32[1]{0}', space=sflag, size = 0x4, scoped, tag = 'scoped memory for tpu_custom_call.1']
    #allocation5 [shape = 'u8[16384]{0}', space=vmem, size = 0x4000, scoped, tag = 'input window, operand 1, single buffered']
    #allocation6 [shape = 's32[1]{0}', space=sflag, size = 0x4, scoped, tag = 'scoped memory for tpu_custom_call.1']
    #allocation7 [shape = 'u8[65536]{0}', space=vmem, size = 0x10000, scoped, tag = 'input window, operand 2, single buffered']
    #allocation8 [shape = 'u8[65536]{0}', space=vmem, size = 0x10000, scoped, tag = 'input window, operand 4, single buffered']
    #allocation9 [shape = 's32[1]{0}', space=sflag, size = 0x4, scoped, tag = 'scoped memory for tpu_custom_call.1']
    #allocation10 [shape = 'u8[6144]{0}', space=vmem, size = 0x1800, scoped, tag = 'output window, operand 0, single buffered']
    %13 = vsyncpa [#allocation3], 0
    %14 = vsyncpa [#allocation6], 0
    %15 = vsyncpa [#allocation9], 0
    %16 = vsyncpa [#allocation4], 0
    // Predicated region
    $region2: #{tpu_custom_call.1} parent=1 // pred_check
      _
    $region3: #{tpu_custom_call.1} parent=1 // pred_check_branch
      %18 = sbr.rel (0) target = $region5
    $region4: #{tpu_custom_call.1} parent=1 // pred_region
      %20 = vsyncadd [#allocation3], 0
      %s21 = sshll.u32 %s0, 4
      %s22 = int_to_ptr.hbm [resolvable:$true] %s21
      %s23 = sshll.u32 [#allocation2], 4
      %s24 = int_to_ptr.vmem [resolvable:$true] %s23
      %29 = dma.hbm_to_vmem [thread:$0]  %s22, 768, %s24, [#allocation3], 128, 128, 8
    $region5: #{tpu_custom_call.1} parent=1 // pred_fallthru
      _
    // Predicated region
    $region6: #{tpu_custom_call.1} parent=1 // pred_check
      _
    $region7: #{tpu_custom_call.1} parent=1 // pred_check_branch
      %31 = sbr.rel (0) target = $region9
    $region8: #{tpu_custom_call.1} parent=1 // pred_region
      %33 = vsyncadd [#allocation6], 0
      %s34 = sshll.u32 %s1, 4
      %s35 = int_to_ptr.hbm [resolvable:$true] %s34
      %s36 = sshll.u32 [#allocation5], 4
      %s37 = int_to_ptr.vmem [resolvable:$true] %s36
      %42 = dma.hbm_to_vmem [thread:$0]  %s35, 512, %s37, [#allocation6], 128, 128, 8
    $region9: #{tpu_custom_call.1} parent=1 // pred_fallthru
      _
    // Predicated region
    $region10: #{tpu_custom_call.1} parent=1 // pred_check
      _
    $region11: #{tpu_custom_call.1} parent=1 // pred_check_branch
      %44 = sbr.rel (0) target = $region13
    $region12: #{tpu_custom_call.1} parent=1 // pred_region
      %46 = vsyncadd [#allocation6], 0
      %s47 = sshll.u32 %s2, 4
      %s48 = int_to_ptr.hbm [resolvable:$true] %s47
      %s49 = sshll.u32 [#allocation7], 4
      %s50 = int_to_ptr.vmem [resolvable:$true] %s49
      %55 = dma.hbm_to_vmem [thread:$0]  %s48, 2048, %s50, [#allocation6], 128, 128, 8
    $region13: #{tpu_custom_call.1} parent=1 // pred_fallthru
      _
    // Predicated region
    $region14: #{tpu_custom_call.1} parent=1 // pred_check
      _
    $region15: #{tpu_custom_call.1} parent=1 // pred_check_branch
      %57 = sbr.rel (0) target = $region17
    $region16: #{tpu_custom_call.1} parent=1 // pred_region
      _
    $region17: #{tpu_custom_call.1} parent=1 // pred_fallthru
      _
    // Predicated region
    $region18: #{tpu_custom_call.1} parent=1 // pred_check
      _
    $region19: #{tpu_custom_call.1} parent=1 // pred_check_branch
      %59 = sbr.rel (0) target = $region21
    $region20: #{tpu_custom_call.1} parent=1 // pred_region
      %61 = vsyncadd [#allocation9], 0
      %s62 = sshll.u32 %s4, 4
      %s63 = int_to_ptr.hbm [resolvable:$true] %s62
      %s64 = sshll.u32 [#allocation8], 4
      %s65 = int_to_ptr.vmem [resolvable:$true] %s64
      %70 = dma.hbm_to_vmem [thread:$0]  %s63, 2048, %s65, [#allocation9], 128, 128, 8
    $region21: #{tpu_custom_call.1} parent=1 // pred_fallthru
      _
    // Predicated region
    $region22: #{tpu_custom_call.1} parent=1 // pred_check
      _
    $region23: #{tpu_custom_call.1} parent=1 // pred_check_branch
      %72 = sbr.rel (0) target = $region25
    $region24: #{tpu_custom_call.1} parent=1 // pred_region
      _
    $region25: #{tpu_custom_call.1} parent=1 // pred_fallthru
      _
    // Predicated region
    $region26: #{tpu_custom_call.1} parent=1 // pred_check
      _
    $region27: #{tpu_custom_call.1} parent=1 // pred_check_branch
      %74 = sbr.rel (0) target = $region29
    $region28: #{tpu_custom_call.1} parent=1 // pred_region
      _
    $region29: #{tpu_custom_call.1} parent=1 // pred_fallthru
      _
    // Predicated region
    $region30: #{tpu_custom_call.1} parent=1 // pred_check
      _
    $region31: #{tpu_custom_call.1} parent=1 // pred_check_branch
      %76 = sbr.rel (0) target = $region33
    $region32: #{tpu_custom_call.1} parent=1 // pred_region
      _
    $region33: #{tpu_custom_call.1} parent=1 // pred_fallthru
      _
    // Predicated region
    $region34: #{tpu_custom_call.1} parent=1 // pred_check
      _
    $region35: #{tpu_custom_call.1} parent=1 // pred_check_branch
      %78 = sbr.rel (0) target = $region37
    $region36: #{tpu_custom_call.1} parent=1 // pred_region
      %80 = dma.done [#allocation3], 768
    $region37: #{tpu_custom_call.1} parent=1 // pred_fallthru
      _
    // Predicated region
    $region38: #{tpu_custom_call.1} parent=1 // pred_check
      _
    $region39: #{tpu_custom_call.1} parent=1 // pred_check_branch
      %82 = sbr.rel (0) target = $region41
    $region40: #{tpu_custom_call.1} parent=1 // pred_region
      %84 = dma.done [#allocation6], 512
    $region41: #{tpu_custom_call.1} parent=1 // pred_fallthru
      _
    // Predicated region
    $region42: #{tpu_custom_call.1} parent=1 // pred_check
      _
    $region43: #{tpu_custom_call.1} parent=1 // pred_check_branch
      %86 = sbr.rel (0) target = $region45
    $region44: #{tpu_custom_call.1} parent=1 // pred_region
      %88 = dma.done [#allocation6], 2048
    $region45: #{tpu_custom_call.1} parent=1 // pred_fallthru
      _
    // Predicated region
    $region46: #{tpu_custom_call.1} parent=1 // pred_check
      _
    $region47: #{tpu_custom_call.1} parent=1 // pred_check_branch
      %90 = sbr.rel (0) target = $region49
    $region48: #{tpu_custom_call.1} parent=1 // pred_region
      %92 = dma.done [#allocation9], 2048
    $region49: #{tpu_custom_call.1} parent=1 // pred_fallthru
      _
    %v93 = vld [vmem:[#allocation5] sm:$0xff]
    %v94 = vld [vmem:[#allocation5 + $0x8] sm:$0xff]
    %v95 = vld [vmem:[#allocation5 + $0x10] sm:$0xff]
    %v96 = vld [vmem:[#allocation5 + $0x18] sm:$0xff]
    %v97 = vld [vmem:[#allocation7] sm:$0xff]
    %v98 = vld [vmem:[#allocation7 + $0x8] sm:$0xff]
    %v99 = vld [vmem:[#allocation7 + $0x10] sm:$0xff]
    %v100 = vld [vmem:[#allocation7 + $0x18] sm:$0xff]
    %v101 = vld [vmem:[#allocation7 + $0x20] sm:$0xff]
    %v102 = vld [vmem:[#allocation7 + $0x28] sm:$0xff]
    %v103 = vld [vmem:[#allocation7 + $0x30] sm:$0xff]
    %v104 = vld [vmem:[#allocation7 + $0x38] sm:$0xff]
    %v105 = vld [vmem:[#allocation7 + $0x40] sm:$0xff]
    %v106 = vld [vmem:[#allocation7 + $0x48] sm:$0xff]
    %v107 = vld [vmem:[#allocation7 + $0x50] sm:$0xff]
    %v108 = vld [vmem:[#allocation7 + $0x58] sm:$0xff]
    %v109 = vld [vmem:[#allocation7 + $0x60] sm:$0xff]
    %v110 = vld [vmem:[#allocation7 + $0x68] sm:$0xff]
    %v111 = vld [vmem:[#allocation7 + $0x70] sm:$0xff]
    %v112 = vld [vmem:[#allocation7 + $0x78] sm:$0xff]
    %v113 = vld [vmem:[#allocation8] sm:$0xff]
    %v114 = vld [vmem:[#allocation8 + $0x8] sm:$0xff]
    %v115 = vld [vmem:[#allocation8 + $0x10] sm:$0xff]
    %v116 = vld [vmem:[#allocation8 + $0x18] sm:$0xff]
    %v117 = vld [vmem:[#allocation8 + $0x20] sm:$0xff]
    %v118 = vld [vmem:[#allocation8 + $0x28] sm:$0xff]
    %v119 = vld [vmem:[#allocation8 + $0x30] sm:$0xff]
    %v120 = vld [vmem:[#allocation8 + $0x38] sm:$0xff]
    %v121 = vld [vmem:[#allocation8 + $0x40] sm:$0xff]
    %v122 = vld [vmem:[#allocation8 + $0x48] sm:$0xff]
    %v123 = vld [vmem:[#allocation8 + $0x50] sm:$0xff]
    %v124 = vld [vmem:[#allocation8 + $0x58] sm:$0xff]
    %v125 = vld [vmem:[#allocation8 + $0x60] sm:$0xff]
    %v126 = vld [vmem:[#allocation8 + $0x68] sm:$0xff]
    %v127 = vld [vmem:[#allocation8 + $0x70] sm:$0xff]
    %v128 = vld [vmem:[#allocation8 + $0x78] sm:$0xff]
    %v129 = vld [vmem:[%s3] sm:$0x1]
    %v130 = vld [vmem:[%s5] sm:$0x1]
    %v131 = vld [vmem:[%s6] sm:$0x1]
    %v132 = vld [vmem:[%s7] sm:$0x1]
    %v134 = vperm.slane %v129, 0
    %136 = vmatpush.xpose.msra.mxu0 %v112
    %137 = vmatpush.xpose.msra.mxu0 %v111
    %138 = vmatpush.xpose.msra.mxu0 %v110
    %139 = vmatpush.xpose.msra.mxu0 %v109
    %140 = vmatpush.xpose.msra.mxu0 %v108
    %141 = vmatpush.xpose.msra.mxu0 %v107
    %142 = vmatpush.xpose.msra.mxu0 %v106
    %143 = vmatpush.xpose.msra.mxu0 %v105
    %144 = vmatpush.xpose.msra.mxu0 %v104
    %145 = vmatpush.xpose.msra.mxu0 %v103
    %146 = vmatpush.xpose.msra.mxu0 %v102
    %147 = vmatpush.xpose.msra.mxu0 %v101
    %148 = vmatpush.xpose.msra.mxu0 %v100
    %149 = vmatpush.xpose.msra.mxu0 %v99
    %150 = vmatpush.xpose.msra.mxu0 %v98
    %151 = vmatpush.xpose.msra.mxu0 %v97
    %152 = vmatmul.f32.gmra.mxu0 %v93
    %v153 = vpop.f32.mrf.mxu0
    %v154 = vadd.f32 %v134, %v153
    %155 = vmatmul.f32.gmra.mxu0 %v94
    %v156 = vpop.f32.mrf.mxu0
    %v157 = vadd.f32 %v134, %v156
    %158 = vmatmul.f32.gmra.mxu0 %v95
    %v159 = vpop.f32.mrf.mxu0
    %v160 = vadd.f32 %v134, %v159
    %161 = vmatmul.f32.gmra.mxu0 %v96
    %v162 = vpop.f32.mrf.mxu0
    %v163 = vadd.f32 %v134, %v162
    %164 = vdwg.mxu0
    %v165 = vld [vmem:[#allocation2] sm:$0xff]
    %v166 = vld [vmem:[#allocation2 + $0x8] sm:$0xff]
    %167 = vmatpush.xpose.msra.mxu0 0.0
    %168 = vmatpush.xpose.msra.mxu0 0.0
    %169 = vmatpush.xpose.msra.mxu0 0.0
    %170 = vmatpush.xpose.msra.mxu0 0.0
    %171 = vmatpush.xpose.msra.mxu0 0.0
    %172 = vmatpush.xpose.msra.mxu0 0.0
    %173 = vmatpush.xpose.msra.mxu0 0.0
    %174 = vmatpush.xpose.msra.mxu0 0.0
    %175 = vmatpush.xpose.msra.mxu0 0.0
    %176 = vmatpush.xpose.msra.mxu0 0.0
    %177 = vmatpush.xpose.msra.mxu0 0.0
    %178 = vmatpush.xpose.msra.mxu0 0.0
    %179 = vmatpush.xpose.msra.mxu0 0.0
    %180 = vmatpush.xpose.msra.mxu0 0.0
    %181 = vmatpush.xpose.msra.mxu0 %v94
    %182 = vmatpush.xpose.msra.mxu0 %v93
    %183 = vmatmul.f32.gmra.mxu0 %v165
    %v184 = vpop.f32.mrf.mxu0
    %v185 = vadd.f32 0.0, %v184
    %186 = vdwg.mxu0
    %187 = vmatpush.xpose.msra.mxu0 0.0
    %188 = vmatpush.xpose.msra.mxu0 0.0
    %189 = vmatpush.xpose.msra.mxu0 0.0
    %190 = vmatpush.xpose.msra.mxu0 0.0
    %191 = vmatpush.xpose.msra.mxu0 0.0
    %192 = vmatpush.xpose.msra.mxu0 0.0
    %193 = vmatpush.xpose.msra.mxu0 0.0
    %194 = vmatpush.xpose.msra.mxu0 0.0
    %195 = vmatpush.xpose.msra.mxu0 0.0
    %196 = vmatpush.xpose.msra.mxu0 0.0
    %197 = vmatpush.xpose.msra.mxu0 0.0
    %198 = vmatpush.xpose.msra.mxu0 0.0
    %199 = vmatpush.xpose.msra.mxu0 0.0
    %200 = vmatpush.xpose.msra.mxu0 0.0
    %201 = vmatpush.xpose.msra.mxu0 %v96
    %202 = vmatpush.xpose.msra.mxu0 %v95
    %203 = vmatmul.f32.gmra.mxu0 %v166
    %v204 = vpop.f32.mrf.mxu0
    %v205 = vadd.f32 0.0, %v204
    %206 = vdwg.mxu0
    %v207 = vtanh.pop %v185
    %v208 = vtanh.pop %v205
    %v210 = vperm.slane %v130, 0
    %212 = vmatpush.xpose.msra.mxu0 %v128
    %213 = vmatpush.xpose.msra.mxu0 %v127
    %214 = vmatpush.xpose.msra.mxu0 %v126
    %215 = vmatpush.xpose.msra.mxu0 %v125
    %216 = vmatpush.xpose.msra.mxu0 %v124
    %217 = vmatpush.xpose.msra.mxu0 %v123
    %218 = vmatpush.xpose.msra.mxu0 %v122
    %219 = vmatpush.xpose.msra.mxu0 %v121
    %220 = vmatpush.xpose.msra.mxu0 %v120
    %221 = vmatpush.xpose.msra.mxu0 %v119
    %222 = vmatpush.xpose.msra.mxu0 %v118
    %223 = vmatpush.xpose.msra.mxu0 %v117
    %224 = vmatpush.xpose.msra.mxu0 %v116
    %225 = vmatpush.xpose.msra.mxu0 %v115
    %226 = vmatpush.xpose.msra.mxu0 %v114
    %227 = vmatpush.xpose.msra.mxu0 %v113
    %228 = vmatmul.f32.gmra.mxu0 %v165
    %v229 = vpop.f32.mrf.mxu0
    %v230 = vadd.f32 %v210, %v229
    %231 = vmatmul.f32.gmra.mxu0 %v166
    %v232 = vpop.f32.mrf.mxu0
    %v233 = vadd.f32 %v210, %v232
    %234 = vdwg.mxu0
    %235 = vxpose.xlu0.b32.start [1/16] %v207, 128
    %236 = vxpose.xlu0.b32.cont [2/16] 0.0, 128
    %237 = vxpose.xlu0.b32.cont [3/16] 0.0, 128
    %238 = vxpose.xlu0.b32.cont [4/16] 0.0, 128
    %239 = vxpose.xlu0.b32.cont [5/16] 0.0, 128
    %240 = vxpose.xlu0.b32.cont [6/16] 0.0, 128
    %241 = vxpose.xlu0.b32.cont [7/16] 0.0, 128
    %242 = vxpose.xlu0.b32.cont [8/16] 0.0, 128
    %243 = vxpose.xlu0.b32.cont [9/16] 0.0, 128
    %244 = vxpose.xlu0.b32.cont [10/16] 0.0, 128
    %245 = vxpose.xlu0.b32.cont [11/16] 0.0, 128
    %246 = vxpose.xlu0.b32.cont [12/16] 0.0, 128
    %247 = vxpose.xlu0.b32.cont [13/16] 0.0, 128
    %248 = vxpose.xlu0.b32.cont [14/16] 0.0, 128
    %249 = vxpose.xlu0.b32.cont [15/16] 0.0, 128
    %250 = vxpose.xlu0.b32.end [16/16] 0.0, 128
    %v251 = vpop.trf.xlu0
    %v252 = vpop.trf.xlu0
    %v253 = vpop.trf.xlu0
    %v254 = vpop.trf.xlu0
    %v255 = vpop.trf.xlu0
    %v256 = vpop.trf.xlu0
    %v257 = vpop.trf.xlu0
    %v258 = vpop.trf.xlu0
    %v259 = vpop.trf.xlu0
    %v260 = vpop.trf.xlu0
    %v261 = vpop.trf.xlu0
    %v262 = vpop.trf.xlu0
    %v263 = vpop.trf.xlu0
    %v264 = vpop.trf.xlu0
    %v265 = vpop.trf.xlu0
    %v266 = vpop.trf.xlu0
    %vm267 = vcmask 64512
    %v269 = vsel %vm267, %v251, 0
    %v272 = vsel %vm267, %v252, 0
    %274 = vmatpush.msra.mxu0 0.0
    %275 = vmatpush.msra.mxu0 0.0
    %276 = vmatpush.msra.mxu0 0.0
    %277 = vmatpush.msra.mxu0 0.0
    %278 = vmatpush.msra.mxu0 0.0
    %279 = vmatpush.msra.mxu0 0.0
    %280 = vmatpush.msra.mxu0 0.0
    %281 = vmatpush.msra.mxu0 0.0
    %282 = vmatpush.msra.mxu0 0.0
    %283 = vmatpush.msra.mxu0 0.0
    %284 = vmatpush.msra.mxu0 0.0
    %285 = vmatpush.msra.mxu0 0.0
    %286 = vmatpush.msra.mxu0 0.0
    %287 = vmatpush.msra.mxu0 0.0
    %288 = vmatpush.msra.mxu0 0.0
    %289 = vmatpush.msra.mxu0 %v230
    %290 = vmatmul.f32.gmra.mxu0 %v269
    %v291 = vpop.f32.mrf.mxu0
    %v292 = vadd.f32 0.0, %v291
    %293 = vmatmul.f32.gmra.mxu0 %v272
    %v294 = vpop.f32.mrf.mxu0
    %v295 = vadd.f32 0.0, %v294
    %296 = vdwg.mxu0
    %297 = vxpose.xlu0.b32.start [1/16] %v208, 128
    %298 = vxpose.xlu0.b32.cont [2/16] 0.0, 128
    %299 = vxpose.xlu0.b32.cont [3/16] 0.0, 128
    %300 = vxpose.xlu0.b32.cont [4/16] 0.0, 128
    %301 = vxpose.xlu0.b32.cont [5/16] 0.0, 128
    %302 = vxpose.xlu0.b32.cont [6/16] 0.0, 128
    %303 = vxpose.xlu0.b32.cont [7/16] 0.0, 128
    %304 = vxpose.xlu0.b32.cont [8/16] 0.0, 128
    %305 = vxpose.xlu0.b32.cont [9/16] 0.0, 128
    %306 = vxpose.xlu0.b32.cont [10/16] 0.0, 128
    %307 = vxpose.xlu0.b32.cont [11/16] 0.0, 128
    %308 = vxpose.xlu0.b32.cont [12/16] 0.0, 128
    %309 = vxpose.xlu0.b32.cont [13/16] 0.0, 128
    %310 = vxpose.xlu0.b32.cont [14/16] 0.0, 128
    %311 = vxpose.xlu0.b32.cont [15/16] 0.0, 128
    %312 = vxpose.xlu0.b32.end [16/16] 0.0, 128
    %v313 = vpop.trf.xlu0
    %v314 = vpop.trf.xlu0
    %v315 = vpop.trf.xlu0
    %v316 = vpop.trf.xlu0
    %v317 = vpop.trf.xlu0
    %v318 = vpop.trf.xlu0
    %v319 = vpop.trf.xlu0
    %v320 = vpop.trf.xlu0
    %v321 = vpop.trf.xlu0
    %v322 = vpop.trf.xlu0
    %v323 = vpop.trf.xlu0
    %v324 = vpop.trf.xlu0
    %v325 = vpop.trf.xlu0
    %v326 = vpop.trf.xlu0
    %v327 = vpop.trf.xlu0
    %v328 = vpop.trf.xlu0
    %v330 = vsel %vm267, %v313, 0
    %v333 = vsel %vm267, %v314, 0
    %335 = vmatpush.msra.mxu0 0.0
    %336 = vmatpush.msra.mxu0 0.0
    %337 = vmatpush.msra.mxu0 0.0
    %338 = vmatpush.msra.mxu0 0.0
    %339 = vmatpush.msra.mxu0 0.0
    %340 = vmatpush.msra.mxu0 0.0
    %341 = vmatpush.msra.mxu0 0.0
    %342 = vmatpush.msra.mxu0 0.0
    %343 = vmatpush.msra.mxu0 0.0
    %344 = vmatpush.msra.mxu0 0.0
    %345 = vmatpush.msra.mxu0 0.0
    %346 = vmatpush.msra.mxu0 0.0
    %347 = vmatpush.msra.mxu0 0.0
    %348 = vmatpush.msra.mxu0 0.0
    %349 = vmatpush.msra.mxu0 0.0
    %350 = vmatpush.msra.mxu0 %v233
    %351 = vmatmul.f32.gmra.mxu0 %v330
    %v352 = vpop.f32.mrf.mxu0
    %v353 = vadd.f32 0.0, %v352
    %354 = vmatmul.f32.gmra.mxu0 %v333
    %v355 = vpop.f32.mrf.mxu0
    %v356 = vadd.f32 0.0, %v355
    %357 = vdwg.mxu0
    %v358 = vadd.f32 %v154, %v292
    %v359 = vadd.f32 %v157, %v295
    %v360 = vadd.f32 %v160, %v353
    %v361 = vadd.f32 %v163, %v356
    %v362 = vtanh.pop %v358
    %v363 = vtanh.pop %v359
    %v364 = vtanh.pop %v360
    %v365 = vtanh.pop %v361
    %vm366 = vcmask 130048
    %v368 = vsel %vm366, %v207, 0
    %370 = vmatpush.msra.mxu0 0.0
    %371 = vmatpush.msra.mxu0 0.0
    %372 = vmatpush.msra.mxu0 0.0
    %373 = vmatpush.msra.mxu0 0.0
    %374 = vmatpush.msra.mxu0 0.0
    %375 = vmatpush.msra.mxu0 0.0
    %376 = vmatpush.msra.mxu0 0.0
    %377 = vmatpush.msra.mxu0 0.0
    %378 = vmatpush.msra.mxu0 0.0
    %379 = vmatpush.msra.mxu0 0.0
    %380 = vmatpush.msra.mxu0 0.0
    %381 = vmatpush.msra.mxu0 0.0
    %382 = vmatpush.msra.mxu0 0.0
    %383 = vmatpush.msra.mxu0 0.0
    %384 = vmatpush.msra.mxu0 %v157
    %385 = vmatpush.msra.mxu0 %v154
    %386 = vmatmul.f32.gmra.mxu0 %v368
    %v387 = vpop.f32.mrf.mxu0
    %v388 = vadd.f32 0.0, %v387
    %389 = vdwg.mxu0
    %v391 = vsel %vm366, %v208, 0
    %393 = vmatpush.msra.mxu0 0.0
    %394 = vmatpush.msra.mxu0 0.0
    %395 = vmatpush.msra.mxu0 0.0
    %396 = vmatpush.msra.mxu0 0.0
    %397 = vmatpush.msra.mxu0 0.0
    %398 = vmatpush.msra.mxu0 0.0
    %399 = vmatpush.msra.mxu0 0.0
    %400 = vmatpush.msra.mxu0 0.0
    %401 = vmatpush.msra.mxu0 0.0
    %402 = vmatpush.msra.mxu0 0.0
    %403 = vmatpush.msra.mxu0 0.0
    %404 = vmatpush.msra.mxu0 0.0
    %405 = vmatpush.msra.mxu0 0.0
    %406 = vmatpush.msra.mxu0 0.0
    %407 = vmatpush.msra.mxu0 %v163
    %408 = vmatpush.msra.mxu0 %v160
    %409 = vmatmul.f32.gmra.mxu0 %v391
    %v410 = vpop.f32.mrf.mxu0
    %v411 = vadd.f32 0.0, %v410
    %412 = vdwg.mxu0
    %v413 = vadd.f32 %v230, %v388
    %v414 = vadd.f32 %v233, %v411
    %v415 = vtanh.pop %v413
    %v416 = vtanh.pop %v414
    %417 = vmatpush.xpose.msra.mxu0 0.0
    %418 = vmatpush.xpose.msra.mxu0 0.0
    %419 = vmatpush.xpose.msra.mxu0 0.0
    %420 = vmatpush.xpose.msra.mxu0 0.0
    %421 = vmatpush.xpose.msra.mxu0 0.0
    %422 = vmatpush.xpose.msra.mxu0 0.0
    %423 = vmatpush.xpose.msra.mxu0 0.0
    %424 = vmatpush.xpose.msra.mxu0 0.0
    %425 = vmatpush.xpose.msra.mxu0 0.0
    %426 = vmatpush.xpose.msra.mxu0 0.0
    %427 = vmatpush.xpose.msra.mxu0 0.0
    %428 = vmatpush.xpose.msra.mxu0 0.0
    %429 = vmatpush.xpose.msra.mxu0 %v365
    %430 = vmatpush.xpose.msra.mxu0 %v364
    %431 = vmatpush.xpose.msra.mxu0 %v363
    %432 = vmatpush.xpose.msra.mxu0 %v362
    %433 = vmatmul.f32.gmra.mxu0 %v131
    %v434 = vpop.f32.mrf.mxu0
    %v435 = vadd.f32 0.0, %v434
    %436 = vdwg.mxu0
    %437 = vmatpush.xpose.msra.mxu0 0.0
    %438 = vmatpush.xpose.msra.mxu0 0.0
    %439 = vmatpush.xpose.msra.mxu0 0.0
    %440 = vmatpush.xpose.msra.mxu0 0.0
    %441 = vmatpush.xpose.msra.mxu0 0.0
    %442 = vmatpush.xpose.msra.mxu0 0.0
    %443 = vmatpush.xpose.msra.mxu0 0.0
    %444 = vmatpush.xpose.msra.mxu0 0.0
    %445 = vmatpush.xpose.msra.mxu0 0.0
    %446 = vmatpush.xpose.msra.mxu0 0.0
    %447 = vmatpush.xpose.msra.mxu0 0.0
    %448 = vmatpush.xpose.msra.mxu0 0.0
    %449 = vmatpush.xpose.msra.mxu0 0.0
    %450 = vmatpush.xpose.msra.mxu0 0.0
    %451 = vmatpush.xpose.msra.mxu0 %v416
    %452 = vmatpush.xpose.msra.mxu0 %v415
    %453 = vmatmul.f32.gmra.mxu0 %v132
    %v454 = vpop.f32.mrf.mxu0
    %v455 = vadd.f32 0.0, %v454
    %456 = vdwg.mxu0
    %vm457 = vcmask 253952
    %v458 = vsel %vm457, %v435, -inf
    %459 = vmax.xlane.f32.xlu0 %v458
    %v460 = vpop.xlane.xlu0 %459
    %v461 = vsub.f32 %v435, %v460
    %v462 = vmul.f32 %v461, 1.442695
    %v463 = vpow.pop %v462
    %v464 = vperm.slane %v463, 0
    %v465 = vlaneseq
    %v466 = vand.u32 %v465, 127
    %v467 = vlaneseq
    %v468 = vshrl.u32 %v467, 7
    %v469 = vmul.u32 %v468, 16
    %vm470 = vcmp.ge.s32.totalorder %v466, %v469
    %v471 = vadd.s32 %v469, 16
    %vm472 = vcmp.lt.s32.totalorder %v466, %v471
    %vm473 = vmand %vm470, %vm472
    %v474 = vsel %vm473, %v464, 0.0
    %vm475 = vcmask 254976
    %v476 = vsel %vm475, %v474, 0.0
    %477 = vadd.xlane.f32.xlu0 %v476
    %v478 = vpop.xlane.xlu0 %477
    %vm479 = vcmask 261120
    %v481 = vsel %vm479, %v474, 0
    %483 = vmatpush.msra.mxu0 0.0
    %484 = vmatpush.msra.mxu0 0.0
    %485 = vmatpush.msra.mxu0 0.0
    %486 = vmatpush.msra.mxu0 0.0
    %487 = vmatpush.msra.mxu0 0.0
    %488 = vmatpush.msra.mxu0 0.0
    %489 = vmatpush.msra.mxu0 0.0
    %490 = vmatpush.msra.mxu0 0.0
    %491 = vmatpush.msra.mxu0 0.0
    %492 = vmatpush.msra.mxu0 0.0
    %493 = vmatpush.msra.mxu0 0.0
    %494 = vmatpush.msra.mxu0 0.0
    %495 = vmatpush.msra.mxu0 %v96
    %496 = vmatpush.msra.mxu0 %v95
    %497 = vmatpush.msra.mxu0 %v94
    %498 = vmatpush.msra.mxu0 %v93
    %499 = vmatmul.f32.gmra.mxu0 %v481
    %v500 = vpop.f32.mrf.mxu0
    %v501 = vadd.f32 0.0, %v500
    %502 = vdwg.mxu0
    %v503 = vrcp.pop %v478
    %v504 = vmul.f32 %v501, %v503
    %vm505 = vcmask 122880
    %v506 = vsel %vm505, %v455, -inf
    %507 = vmax.xlane.f32.xlu0 %v506
    %v508 = vpop.xlane.xlu0 %507
    %v509 = vsub.f32 %v455, %v508
    %v510 = vmul.f32 %v509, 1.442695
    %v511 = vpow.pop %v510
    %v512 = vperm.slane %v511, 0
    %v513 = vmul.u32 %v468, 8
    %vm514 = vcmp.ge.s32.totalorder %v466, %v513
    %v515 = vadd.s32 %v513, 8
    %vm516 = vcmp.lt.s32.totalorder %v466, %v515
    %vm517 = vmand %vm514, %vm516
    %v518 = vsel %vm517, %v512, 0.0
    %vm519 = vcmask 123904
    %v520 = vsel %vm519, %v518, 0.0
    %521 = vadd.xlane.f32.xlu0 %v520
    %v522 = vpop.xlane.xlu0 %521
    %v524 = vsel %vm366, %v518, 0
    %526 = vmatpush.msra.mxu0 0.0
    %527 = vmatpush.msra.mxu0 0.0
    %528 = vmatpush.msra.mxu0 0.0
    %529 = vmatpush.msra.mxu0 0.0
    %530 = vmatpush.msra.mxu0 0.0
    %531 = vmatpush.msra.mxu0 0.0
    %532 = vmatpush.msra.mxu0 0.0
    %533 = vmatpush.msra.mxu0 0.0
    %534 = vmatpush.msra.mxu0 0.0
    %535 = vmatpush.msra.mxu0 0.0
    %536 = vmatpush.msra.mxu0 0.0
    %537 = vmatpush.msra.mxu0 0.0
    %538 = vmatpush.msra.mxu0 0.0
    %539 = vmatpush.msra.mxu0 0.0
    %540 = vmatpush.msra.mxu0 %v166
    %541 = vmatpush.msra.mxu0 %v165
    %542 = vmatmul.f32.gmra.mxu0 %v524
    %v543 = vpop.f32.mrf.mxu0
    %v544 = vadd.f32 0.0, %v543
    %545 = vdwg.mxu0
    %v546 = vrcp.pop %v522
    %v547 = vmul.f32 %v544, %v546
    %v549 = vrot.slane %v547, 6
    %vm551 = vcmask 1041408
    %v552 = vsel %vm551, %v504, %v549
    %553 = vst [vmem:[#allocation10] sm:$0xf] %v552
    %s554 = scalar_lea.vmem [#allocation2], 16
    %v555 = vld [vmem:[%s554] sm:$0xff]
    %v556 = vld [vmem:[%s554 + $0x8] sm:$0xff]
    %557 = vmatpush.xpose.msra.mxu0 0.0
    %558 = vmatpush.xpose.msra.mxu0 0.0
    %559 = vmatpush.xpose.msra.mxu0 0.0
    %560 = vmatpush.xpose.msra.mxu0 0.0
    %561 = vmatpush.xpose.msra.mxu0 0.0
    %562 = vmatpush.xpose.msra.mxu0 0.0
    %563 = vmatpush.xpose.msra.mxu0 0.0
    %564 = vmatpush.xpose.msra.mxu0 0.0
    %565 = vmatpush.xpose.msra.mxu0 0.0
    %566 = vmatpush.xpose.msra.mxu0 0.0
    %567 = vmatpush.xpose.msra.mxu0 0.0
    %568 = vmatpush.xpose.msra.mxu0 0.0
    %569 = vmatpush.xpose.msra.mxu0 0.0
    %570 = vmatpush.xpose.msra.mxu0 0.0
    %571 = vmatpush.xpose.msra.mxu0 %v94
    %572 = vmatpush.xpose.msra.mxu0 %v93
    %573 = vmatmul.f32.gmra.mxu0 %v555
    %v574 = vpop.f32.mrf.mxu0
    %v575 = vadd.f32 0.0, %v574
    %576 = vdwg.mxu0
    %577 = vmatpush.xpose.msra.mxu0 0.0
    %578 = vmatpush.xpose.msra.mxu0 0.0
    %579 = vmatpush.xpose.msra.mxu0 0.0
    %580 = vmatpush.xpose.msra.mxu0 0.0
    %581 = vmatpush.xpose.msra.mxu0 0.0
    %582 = vmatpush.xpose.msra.mxu0 0.0
    %583 = vmatpush.xpose.msra.mxu0 0.0
    %584 = vmatpush.xpose.msra.mxu0 0.0
    %585 = vmatpush.xpose.msra.mxu0 0.0
    %586 = vmatpush.xpose.msra.mxu0 0.0
    %587 = vmatpush.xpose.msra.mxu0 0.0
    %588 = vmatpush.xpose.msra.mxu0 0.0
    %589 = vmatpush.xpose.msra.mxu0 0.0
    %590 = vmatpush.xpose.msra.mxu0 0.0
    %591 = vmatpush.xpose.msra.mxu0 %v96
    %592 = vmatpush.xpose.msra.mxu0 %v95
    %593 = vmatmul.f32.gmra.mxu0 %v556
    %v594 = vpop.f32.mrf.mxu0
    %v595 = vadd.f32 0.0, %v594
    %596 = vdwg.mxu0
    %v597 = vtanh.pop %v575
    %v598 = vtanh.pop %v595
    %599 = vmatpush.xpose.msra.mxu0 %v128
    %600 = vmatpush.xpose.msra.mxu0 %v127
    %601 = vmatpush.xpose.msra.mxu0 %v126
    %602 = vmatpush.xpose.msra.mxu0 %v125
    %603 = vmatpush.xpose.msra.mxu0 %v124
    %604 = vmatpush.xpose.msra.mxu0 %v123
    %605 = vmatpush.xpose.msra.mxu0 %v122
    %606 = vmatpush.xpose.msra.mxu0 %v121
    %607 = vmatpush.xpose.msra.mxu0 %v120
    %608 = vmatpush.xpose.msra.mxu0 %v119
    %609 = vmatpush.xpose.msra.mxu0 %v118
    %610 = vmatpush.xpose.msra.mxu0 %v117
    %611 = vmatpush.xpose.msra.mxu0 %v116
    %612 = vmatpush.xpose.msra.mxu0 %v115
    %613 = vmatpush.xpose.msra.mxu0 %v114
    %614 = vmatpush.xpose.msra.mxu0 %v113
    %615 = vmatmul.f32.gmra.mxu0 %v555
    %v616 = vpop.f32.mrf.mxu0
    %v617 = vadd.f32 %v210, %v616
    %618 = vmatmul.f32.gmra.mxu0 %v556
    %v619 = vpop.f32.mrf.mxu0
    %v620 = vadd.f32 %v210, %v619
    %621 = vdwg.mxu0
    %622 = vxpose.xlu0.b32.start [1/16] %v597, 128
    %623 = vxpose.xlu0.b32.cont [2/16] 0.0, 128
    %624 = vxpose.xlu0.b32.cont [3/16] 0.0, 128
    %625 = vxpose.xlu0.b32.cont [4/16] 0.0, 128
    %626 = vxpose.xlu0.b32.cont [5/16] 0.0, 128
    %627 = vxpose.xlu0.b32.cont [6/16] 0.0, 128
    %628 = vxpose.xlu0.b32.cont [7/16] 0.0, 128
    %629 = vxpose.xlu0.b32.cont [8/16] 0.0, 128
    %630 = vxpose.xlu0.b32.cont [9/16] 0.0, 128
    %631 = vxpose.xlu0.b32.cont [10/16] 0.0, 128
    %632 = vxpose.xlu0.b32.cont [11/16] 0.0, 128
    %633 = vxpose.xlu0.b32.cont [12/16] 0.0, 128
    %634 = vxpose.xlu0.b32.cont [13/16] 0.0, 128
    %635 = vxpose.xlu0.b32.cont [14/16] 0.0, 128
    %636 = vxpose.xlu0.b32.cont [15/16] 0.0, 128
    %637 = vxpose.xlu0.b32.end [16/16] 0.0, 128
    %v638 = vpop.trf.xlu0
    %v639 = vpop.trf.xlu0
    %v640 = vpop.trf.xlu0
    %v641 = vpop.trf.xlu0
    %v642 = vpop.trf.xlu0
    %v643 = vpop.trf.xlu0
    %v644 = vpop.trf.xlu0
    %v645 = vpop.trf.xlu0
    %v646 = vpop.trf.xlu0
    %v647 = vpop.trf.xlu0
    %v648 = vpop.trf.xlu0
    %v649 = vpop.trf.xlu0
    %v650 = vpop.trf.xlu0
    %v651 = vpop.trf.xlu0
    %v652 = vpop.trf.xlu0
    %v653 = vpop.trf.xlu0
    %v655 = vsel %vm267, %v638, 0
    %v658 = vsel %vm267, %v639, 0
    %660 = vmatpush.msra.mxu0 0.0
    %661 = vmatpush.msra.mxu0 0.0
    %662 = vmatpush.msra.mxu0 0.0
    %663 = vmatpush.msra.mxu0 0.0
    %664 = vmatpush.msra.mxu0 0.0
    %665 = vmatpush.msra.mxu0 0.0
    %666 = vmatpush.msra.mxu0 0.0
    %667 = vmatpush.msra.mxu0 0.0
    %668 = vmatpush.msra.mxu0 0.0
    %669 = vmatpush.msra.mxu0 0.0
    %670 = vmatpush.msra.mxu0 0.0
    %671 = vmatpush.msra.mxu0 0.0
    %672 = vmatpush.msra.mxu0 0.0
    %673 = vmatpush.msra.mxu0 0.0
    %674 = vmatpush.msra.mxu0 0.0
    %675 = vmatpush.msra.mxu0 %v617
    %676 = vmatmul.f32.gmra.mxu0 %v655
    %v677 = vpop.f32.mrf.mxu0
    %v678 = vadd.f32 0.0, %v677
    %679 = vmatmul.f32.gmra.mxu0 %v658
    %v680 = vpop.f32.mrf.mxu0
    %v681 = vadd.f32 0.0, %v680
    %682 = vdwg.mxu0
    %683 = vxpose.xlu0.b32.start [1/16] %v598, 128
    %684 = vxpose.xlu0.b32.cont [2/16] 0.0, 128
    %685 = vxpose.xlu0.b32.cont [3/16] 0.0, 128
    %686 = vxpose.xlu0.b32.cont [4/16] 0.0, 128
    %687 = vxpose.xlu0.b32.cont [5/16] 0.0, 128
    %688 = vxpose.xlu0.b32.cont [6/16] 0.0, 128
    %689 = vxpose.xlu0.b32.cont [7/16] 0.0, 128
    %690 = vxpose.xlu0.b32.cont [8/16] 0.0, 128
    %691 = vxpose.xlu0.b32.cont [9/16] 0.0, 128
    %692 = vxpose.xlu0.b32.cont [10/16] 0.0, 128
    %693 = vxpose.xlu0.b32.cont [11/16] 0.0, 128
    %694 = vxpose.xlu0.b32.cont [12/16] 0.0, 128
    %695 = vxpose.xlu0.b32.cont [13/16] 0.0, 128
    %696 = vxpose.xlu0.b32.cont [14/16] 0.0, 128
    %697 = vxpose.xlu0.b32.cont [15/16] 0.0, 128
    %698 = vxpose.xlu0.b32.end [16/16] 0.0, 128
    %v699 = vpop.trf.xlu0
    %v700 = vpop.trf.xlu0
    %v701 = vpop.trf.xlu0
    %v702 = vpop.trf.xlu0
    %v703 = vpop.trf.xlu0
    %v704 = vpop.trf.xlu0
    %v705 = vpop.trf.xlu0
    %v706 = vpop.trf.xlu0
    %v707 = vpop.trf.xlu0
    %v708 = vpop.trf.xlu0
    %v709 = vpop.trf.xlu0
    %v710 = vpop.trf.xlu0
    %v711 = vpop.trf.xlu0
    %v712 = vpop.trf.xlu0
    %v713 = vpop.trf.xlu0
    %v714 = vpop.trf.xlu0
    %v716 = vsel %vm267, %v699, 0
    %v719 = vsel %vm267, %v700, 0
    %721 = vmatpush.msra.mxu0 0.0
    %722 = vmatpush.msra.mxu0 0.0
    %723 = vmatpush.msra.mxu0 0.0
    %724 = vmatpush.msra.mxu0 0.0
    %725 = vmatpush.msra.mxu0 0.0
    %726 = vmatpush.msra.mxu0 0.0
    %727 = vmatpush.msra.mxu0 0.0
    %728 = vmatpush.msra.mxu0 0.0
    %729 = vmatpush.msra.mxu0 0.0
    %730 = vmatpush.msra.mxu0 0.0
    %731 = vmatpush.msra.mxu0 0.0
    %732 = vmatpush.msra.mxu0 0.0
    %733 = vmatpush.msra.mxu0 0.0
    %734 = vmatpush.msra.mxu0 0.0
    %735 = vmatpush.msra.mxu0 0.0
    %736 = vmatpush.msra.mxu0 %v620
    %737 = vmatmul.f32.gmra.mxu0 %v716
    %v738 = vpop.f32.mrf.mxu0
    %v739 = vadd.f32 0.0, %v738
    %740 = vmatmul.f32.gmra.mxu0 %v719
    %v741 = vpop.f32.mrf.mxu0
    %v742 = vadd.f32 0.0, %v741
    %743 = vdwg.mxu0
    %v744 = vadd.f32 %v154, %v678
    %v745 = vadd.f32 %v157, %v681
    %v746 = vadd.f32 %v160, %v739
    %v747 = vadd.f32 %v163, %v742
    %v748 = vtanh.pop %v744
    %v749 = vtanh.pop %v745
    %v750 = vtanh.pop %v746
    %v751 = vtanh.pop %v747
    %v753 = vsel %vm366, %v597, 0
    %755 = vmatpush.msra.mxu0 0.0
    %756 = vmatpush.msra.mxu0 0.0
    %757 = vmatpush.msra.mxu0 0.0
    %758 = vmatpush.msra.mxu0 0.0
    %759 = vmatpush.msra.mxu0 0.0
    %760 = vmatpush.msra.mxu0 0.0
    %761 = vmatpush.msra.mxu0 0.0
    %762 = vmatpush.msra.mxu0 0.0
    %763 = vmatpush.msra.mxu0 0.0
    %764 = vmatpush.msra.mxu0 0.0
    %765 = vmatpush.msra.mxu0 0.0
    %766 = vmatpush.msra.mxu0 0.0
    %767 = vmatpush.msra.mxu0 0.0
    %768 = vmatpush.msra.mxu0 0.0
    %769 = vmatpush.msra.mxu0 %v157
    %770 = vmatpush.msra.mxu0 %v154
    %771 = vmatmul.f32.gmra.mxu0 %v753
    %v772 = vpop.f32.mrf.mxu0
    %v773 = vadd.f32 0.0, %v772
    %774 = vdwg.mxu0
    %v776 = vsel %vm366, %v598, 0
    %778 = vmatpush.msra.mxu0 0.0
    %779 = vmatpush.msra.mxu0 0.0
    %780 = vmatpush.msra.mxu0 0.0
    %781 = vmatpush.msra.mxu0 0.0
    %782 = vmatpush.msra.mxu0 0.0
    %783 = vmatpush.msra.mxu0 0.0
    %784 = vmatpush.msra.mxu0 0.0
    %785 = vmatpush.msra.mxu0 0.0
    %786 = vmatpush.msra.mxu0 0.0
    %787 = vmatpush.msra.mxu0 0.0
    %788 = vmatpush.msra.mxu0 0.0
    %789 = vmatpush.msra.mxu0 0.0
    %790 = vmatpush.msra.mxu0 0.0
    %791 = vmatpush.msra.mxu0 0.0
    %792 = vmatpush.msra.mxu0 %v163
    %793 = vmatpush.msra.mxu0 %v160
    %794 = vmatmul.f32.gmra.mxu0 %v776
    %v795 = vpop.f32.mrf.mxu0
    %v796 = vadd.f32 0.0, %v795
    %797 = vdwg.mxu0
    %v798 = vadd.f32 %v617, %v773
    %v799 = vadd.f32 %v620, %v796
    %v800 = vtanh.pop %v798
    %v801 = vtanh.pop %v799
    %802 = vmatpush.xpose.msra.mxu0 0.0
    %803 = vmatpush.xpose.msra.mxu0 0.0
    %804 = vmatpush.xpose.msra.mxu0 0.0
    %805 = vmatpush.xpose.msra.mxu0 0.0
    %806 = vmatpush.xpose.msra.mxu0 0.0
    %807 = vmatpush.xpose.msra.mxu0 0.0
    %808 = vmatpush.xpose.msra.mxu0 0.0
    %809 = vmatpush.xpose.msra.mxu0 0.0
    %810 = vmatpush.xpose.msra.mxu0 0.0
    %811 = vmatpush.xpose.msra.mxu0 0.0
    %812 = vmatpush.xpose.msra.mxu0 0.0
    %813 = vmatpush.xpose.msra.mxu0 0.0
    %814 = vmatpush.xpose.msra.mxu0 %v751
    %815 = vmatpush.xpose.msra.mxu0 %v750
    %816 = vmatpush.xpose.msra.mxu0 %v749
    %817 = vmatpush.xpose.msra.mxu0 %v748
    %818 = vmatmul.f32.gmra.mxu0 %v131
    %v819 = vpop.f32.mrf.mxu0
    %v820 = vadd.f32 0.0, %v819
    %821 = vdwg.mxu0
    %822 = vmatpush.xpose.msra.mxu0 0.0
    %823 = vmatpush.xpose.msra.mxu0 0.0
    %824 = vmatpush.xpose.msra.mxu0 0.0
    %825 = vmatpush.xpose.msra.mxu0 0.0
    %826 = vmatpush.xpose.msra.mxu0 0.0
    %827 = vmatpush.xpose.msra.mxu0 0.0
    %828 = vmatpush.xpose.msra.mxu0 0.0
    %829 = vmatpush.xpose.msra.mxu0 0.0
    %830 = vmatpush.xpose.msra.mxu0 0.0
    %831 = vmatpush.xpose.msra.mxu0 0.0
    %832 = vmatpush.xpose.msra.mxu0 0.0
    %833 = vmatpush.xpose.msra.mxu0 0.0
    %834 = vmatpush.xpose.msra.mxu0 0.0
    %835 = vmatpush.xpose.msra.mxu0 0.0
    %836 = vmatpush.xpose.msra.mxu0 %v801
    %837 = vmatpush.xpose.msra.mxu0 %v800
    %838 = vmatmul.f32.gmra.mxu0 %v132
    %v839 = vpop.f32.mrf.mxu0
    %v840 = vadd.f32 0.0, %v839
    %841 = vdwg.mxu0
    %v842 = vsel %vm457, %v820, -inf
    %843 = vmax.xlane.f32.xlu0 %v842
    %v844 = vpop.xlane.xlu0 %843
    %v845 = vsub.f32 %v820, %v844
    %v846 = vmul.f32 %v845, 1.442695
    %v847 = vpow.pop %v846
    %v848 = vperm.slane %v847, 0
    %v849 = vsel %vm473, %v848, 0.0
    %v850 = vsel %vm475, %v849, 0.0
    %851 = vadd.xlane.f32.xlu0 %v850
    %v852 = vpop.xlane.xlu0 %851
    %v854 = vsel %vm479, %v849, 0
    %856 = vmatpush.msra.mxu0 0.0
    %857 = vmatpush.msra.mxu0 0.0
    %858 = vmatpush.msra.mxu0 0.0
    %859 = vmatpush.msra.mxu0 0.0
    %860 = vmatpush.msra.mxu0 0.0
    %861 = vmatpush.msra.mxu0 0.0
    %862 = vmatpush.msra.mxu0 0.0
    %863 = vmatpush.msra.mxu0 0.0
    %864 = vmatpush.msra.mxu0 0.0
    %865 = vmatpush.msra.mxu0 0.0
    %866 = vmatpush.msra.mxu0 0.0
    %867 = vmatpush.msra.mxu0 0.0
    %868 = vmatpush.msra.mxu0 %v96
    %869 = vmatpush.msra.mxu0 %v95
    %870 = vmatpush.msra.mxu0 %v94
    %871 = vmatpush.msra.mxu0 %v93
    %872 = vmatmul.f32.gmra.mxu0 %v854
    %v873 = vpop.f32.mrf.mxu0
    %v874 = vadd.f32 0.0, %v873
    %875 = vdwg.mxu0
    %v876 = vrcp.pop %v852
    %v877 = vmul.f32 %v874, %v876
    %v878 = vsel %vm505, %v840, -inf
    %879 = vmax.xlane.f32.xlu0 %v878
    %v880 = vpop.xlane.xlu0 %879
    %v881 = vsub.f32 %v840, %v880
    %v882 = vmul.f32 %v881, 1.442695
    %v883 = vpow.pop %v882
    %v884 = vperm.slane %v883, 0
    %v885 = vsel %vm517, %v884, 0.0
    %v886 = vsel %vm519, %v885, 0.0
    %887 = vadd.xlane.f32.xlu0 %v886
    %v888 = vpop.xlane.xlu0 %887
    %v890 = vsel %vm366, %v885, 0
    %892 = vmatpush.msra.mxu0 0.0
    %893 = vmatpush.msra.mxu0 0.0
    %894 = vmatpush.msra.mxu0 0.0
    %895 = vmatpush.msra.mxu0 0.0
    %896 = vmatpush.msra.mxu0 0.0
    %897 = vmatpush.msra.mxu0 0.0
    %898 = vmatpush.msra.mxu0 0.0
    %899 = vmatpush.msra.mxu0 0.0
    %900 = vmatpush.msra.mxu0 0.0
    %901 = vmatpush.msra.mxu0 0.0
    %902 = vmatpush.msra.mxu0 0.0
    %903 = vmatpush.msra.mxu0 0.0
    %904 = vmatpush.msra.mxu0 0.0
    %905 = vmatpush.msra.mxu0 0.0
    %906 = vmatpush.msra.mxu0 %v556
    %907 = vmatpush.msra.mxu0 %v555
    %908 = vmatmul.f32.gmra.mxu0 %v890
    %v909 = vpop.f32.mrf.mxu0
    %v910 = vadd.f32 0.0, %v909
    %911 = vdwg.mxu0
    %v912 = vrcp.pop %v888
    %v913 = vmul.f32 %v910, %v912
    %v915 = vrot.slane %v913, 6
    %v917 = vsel %vm551, %v877, %v915
    %s918 = scalar_lea.vmem [#allocation10], 4
    %919 = vst [vmem:[%s918] sm:$0xf] %v917
    %s920 = scalar_lea.vmem [#allocation2], 32
    %v921 = vld [vmem:[%s920] sm:$0xff]
    %v922 = vld [vmem:[%s920 + $0x8] sm:$0xff]
    %923 = vmatpush.xpose.msra.mxu0 0.0
    %924 = vmatpush.xpose.msra.mxu0 0.0
    %925 = vmatpush.xpose.msra.mxu0 0.0
    %926 = vmatpush.xpose.msra.mxu0 0.0
    %927 = vmatpush.xpose.msra.mxu0 0.0
    %928 = vmatpush.xpose.msra.mxu0 0.0
    %929 = vmatpush.xpose.msra.mxu0 0.0
    %930 = vmatpush.xpose.msra.mxu0 0.0
    %931 = vmatpush.xpose.msra.mxu0 0.0
    %932 = vmatpush.xpose.msra.mxu0 0.0
    %933 = vmatpush.xpose.msra.mxu0 0.0
    %934 = vmatpush.xpose.msra.mxu0 0.0
    %935 = vmatpush.xpose.msra.mxu0 0.0
    %936 = vmatpush.xpose.msra.mxu0 0.0
    %937 = vmatpush.xpose.msra.mxu0 %v94
    %938 = vmatpush.xpose.msra.mxu0 %v93
    %939 = vmatmul.f32.gmra.mxu0 %v921
    %v940 = vpop.f32.mrf.mxu0
    %v941 = vadd.f32 0.0, %v940
    %942 = vdwg.mxu0
    %943 = vmatpush.xpose.msra.mxu0 0.0
    %944 = vmatpush.xpose.msra.mxu0 0.0
    %945 = vmatpush.xpose.msra.mxu0 0.0
    %946 = vmatpush.xpose.msra.mxu0 0.0
    %947 = vmatpush.xpose.msra.mxu0 0.0
    %948 = vmatpush.xpose.msra.mxu0 0.0
    %949 = vmatpush.xpose.msra.mxu0 0.0
    %950 = vmatpush.xpose.msra.mxu0 0.0
    %951 = vmatpush.xpose.msra.mxu0 0.0
    %952 = vmatpush.xpose.msra.mxu0 0.0
    %953 = vmatpush.xpose.msra.mxu0 0.0
    %954 = vmatpush.xpose.msra.mxu0 0.0
    %955 = vmatpush.xpose.msra.mxu0 0.0
    %956 = vmatpush.xpose.msra.mxu0 0.0
    %957 = vmatpush.xpose.msra.mxu0 %v96
    %958 = vmatpush.xpose.msra.mxu0 %v95
    %959 = vmatmul.f32.gmra.mxu0 %v922
    %v960 = vpop.f32.mrf.mxu0
    %v961 = vadd.f32 0.0, %v960
    %962 = vdwg.mxu0
    %v963 = vtanh.pop %v941
    %v964 = vtanh.pop %v961
    %965 = vmatpush.xpose.msra.mxu0 %v128
    %966 = vmatpush.xpose.msra.mxu0 %v127
    %967 = vmatpush.xpose.msra.mxu0 %v126
    %968 = vmatpush.xpose.msra.mxu0 %v125
    %969 = vmatpush.xpose.msra.mxu0 %v124
    %970 = vmatpush.xpose.msra.mxu0 %v123
    %971 = vmatpush.xpose.msra.mxu0 %v122
    %972 = vmatpush.xpose.msra.mxu0 %v121
    %973 = vmatpush.xpose.msra.mxu0 %v120
    %974 = vmatpush.xpose.msra.mxu0 %v119
    %975 = vmatpush.xpose.msra.mxu0 %v118
    %976 = vmatpush.xpose.msra.mxu0 %v117
    %977 = vmatpush.xpose.msra.mxu0 %v116
    %978 = vmatpush.xpose.msra.mxu0 %v115
    %979 = vmatpush.xpose.msra.mxu0 %v114
    %980 = vmatpush.xpose.msra.mxu0 %v113
    %981 = vmatmul.f32.gmra.mxu0 %v921
    %v982 = vpop.f32.mrf.mxu0
    %v983 = vadd.f32 %v210, %v982
    %984 = vmatmul.f32.gmra.mxu0 %v922
    %v985 = vpop.f32.mrf.mxu0
    %v986 = vadd.f32 %v210, %v985
    %987 = vdwg.mxu0
    %988 = vxpose.xlu0.b32.start [1/16] %v963, 128
    %989 = vxpose.xlu0.b32.cont [2/16] 0.0, 128
    %990 = vxpose.xlu0.b32.cont [3/16] 0.0, 128
    %991 = vxpose.xlu0.b32.cont [4/16] 0.0, 128
    %992 = vxpose.xlu0.b32.cont [5/16] 0.0, 128
    %993 = vxpose.xlu0.b32.cont [6/16] 0.0, 128
    %994 = vxpose.xlu0.b32.cont [7/16] 0.0, 128
    %995 = vxpose.xlu0.b32.cont [8/16] 0.0, 128
    %996 = vxpose.xlu0.b32.cont [9/16] 0.0, 128
    %997 = vxpose.xlu0.b32.cont [10/16] 0.0, 128
    %998 = vxpose.xlu0.b32.cont [11/16] 0.0, 128
    %999 = vxpose.xlu0.b32.cont [12/16] 0.0, 128
    %1000 = vxpose.xlu0.b32.cont [13/16] 0.0, 128
    %1001 = vxpose.xlu0.b32.cont [14/16] 0.0, 128
    %1002 = vxpose.xlu0.b32.cont [15/16] 0.0, 128
    %1003 = vxpose.xlu0.b32.end [16/16] 0.0, 128
    %v1004 = vpop.trf.xlu0
    %v1005 = vpop.trf.xlu0
    %v1006 = vpop.trf.xlu0
    %v1007 = vpop.trf.xlu0
    %v1008 = vpop.trf.xlu0
    %v1009 = vpop.trf.xlu0
    %v1010 = vpop.trf.xlu0
    %v1011 = vpop.trf.xlu0
    %v1012 = vpop.trf.xlu0
    %v1013 = vpop.trf.xlu0
    %v1014 = vpop.trf.xlu0
    %v1015 = vpop.trf.xlu0
    %v1016 = vpop.trf.xlu0
    %v1017 = vpop.trf.xlu0
    %v1018 = vpop.trf.xlu0
    %v1019 = vpop.trf.xlu0
    %v1021 = vsel %vm267, %v1004, 0
    %v1024 = vsel %vm267, %v1005, 0
    %1026 = vmatpush.msra.mxu0 0.0
    %1027 = vmatpush.msra.mxu0 0.0
    %1028 = vmatpush.msra.mxu0 0.0
    %1029 = vmatpush.msra.mxu0 0.0
    %1030 = vmatpush.msra.mxu0 0.0
    %1031 = vmatpush.msra.mxu0 0.0
    %1032 = vmatpush.msra.mxu0 0.0
    %1033 = vmatpush.msra.mxu0 0.0
    %1034 = vmatpush.msra.mxu0 0.0
    %1035 = vmatpush.msra.mxu0 0.0
    %1036 = vmatpush.msra.mxu0 0.0
    %1037 = vmatpush.msra.mxu0 0.0
    %1038 = vmatpush.msra.mxu0 0.0
    %1039 = vmatpush.msra.mxu0 0.0
    %1040 = vmatpush.msra.mxu0 0.0
    %1041 = vmatpush.msra.mxu0 %v983
    %1042 = vmatmul.f32.gmra.mxu0 %v1021
    %v1043 = vpop.f32.mrf.mxu0
    %v1044 = vadd.f32 0.0, %v1043
    %1045 = vmatmul.f32.gmra.mxu0 %v1024
    %v1046 = vpop.f32.mrf.mxu0
    %v1047 = vadd.f32 0.0, %v1046
    %1048 = vdwg.mxu0
    %1049 = vxpose.xlu0.b32.start [1/16] %v964, 128
    %1050 = vxpose.xlu0.b32.cont [2/16] 0.0, 128
    %1051 = vxpose.xlu0.b32.cont [3/16] 0.0, 128
    %1052 = vxpose.xlu0.b32.cont [4/16] 0.0, 128
    %1053 = vxpose.xlu0.b32.cont [5/16] 0.0, 128
    %1054 = vxpose.xlu0.b32.cont [6/16] 0.0, 128
    %1055 = vxpose.xlu0.b32.cont [7/16] 0.0, 128
    %1056 = vxpose.xlu0.b32.cont [8/16] 0.0, 128
    %1057 = vxpose.xlu0.b32.cont [9/16] 0.0, 128
    %1058 = vxpose.xlu0.b32.cont [10/16] 0.0, 128
    %1059 = vxpose.xlu0.b32.cont [11/16] 0.0, 128
    %1060 = vxpose.xlu0.b32.cont [12/16] 0.0, 128
    %1061 = vxpose.xlu0.b32.cont [13/16] 0.0, 128
    %1062 = vxpose.xlu0.b32.cont [14/16] 0.0, 128
    %1063 = vxpose.xlu0.b32.cont [15/16] 0.0, 128
    %1064 = vxpose.xlu0.b32.end [16/16] 0.0, 128
    %v1065 = vpop.trf.xlu0
    %v1066 = vpop.trf.xlu0
    %v1067 = vpop.trf.xlu0
    %v1068 = vpop.trf.xlu0
    %v1069 = vpop.trf.xlu0
    %v1070 = vpop.trf.xlu0
    %v1071 = vpop.trf.xlu0
    %v1072 = vpop.trf.xlu0
    %v1073 = vpop.trf.xlu0
    %v1074 = vpop.trf.xlu0
    %v1075 = vpop.trf.xlu0
    %v1076 = vpop.trf.xlu0
    %v1077 = vpop.trf.xlu0
    %v1078 = vpop.trf.xlu0
    %v1079 = vpop.trf.xlu0
    %v1080 = vpop.trf.xlu0
    %v1082 = vsel %vm267, %v1065, 0
    %v1085 = vsel %vm267, %v1066, 0
    %1087 = vmatpush.msra.mxu0 0.0
    %1088 = vmatpush.msra.mxu0 0.0
    %1089 = vmatpush.msra.mxu0 0.0
    %1090 = vmatpush.msra.mxu0 0.0
    %1091 = vmatpush.msra.mxu0 0.0
    %1092 = vmatpush.msra.mxu0 0.0
    %1093 = vmatpush.msra.mxu0 0.0
    %1094 = vmatpush.msra.mxu0 0.0
    %1095 = vmatpush.msra.mxu0 0.0
    %1096 = vmatpush.msra.mxu0 0.0
    %1097 = vmatpush.msra.mxu0 0.0
    %1098 = vmatpush.msra.mxu0 0.0
    %1099 = vmatpush.msra.mxu0 0.0
    %1100 = vmatpush.msra.mxu0 0.0
    %1101 = vmatpush.msra.mxu0 0.0
    %1102 = vmatpush.msra.mxu0 %v986
    %1103 = vmatmul.f32.gmra.mxu0 %v1082
    %v1104 = vpop.f32.mrf.mxu0
    %v1105 = vadd.f32 0.0, %v1104
    %1106 = vmatmul.f32.gmra.mxu0 %v1085
    %v1107 = vpop.f32.mrf.mxu0
    %v1108 = vadd.f32 0.0, %v1107
    %1109 = vdwg.mxu0
    %v1110 = vadd.f32 %v154, %v1044
    %v1111 = vadd.f32 %v157, %v1047
    %v1112 = vadd.f32 %v160, %v1105
    %v1113 = vadd.f32 %v163, %v1108
    %v1114 = vtanh.pop %v1110
    %v1115 = vtanh.pop %v1111
    %v1116 = vtanh.pop %v1112
    %v1117 = vtanh.pop %v1113
    %v1119 = vsel %vm366, %v963, 0
    %1121 = vmatpush.msra.mxu0 0.0
    %1122 = vmatpush.msra.mxu0 0.0
    %1123 = vmatpush.msra.mxu0 0.0
    %1124 = vmatpush.msra.mxu0 0.0
    %1125 = vmatpush.msra.mxu0 0.0
    %1126 = vmatpush.msra.mxu0 0.0
    %1127 = vmatpush.msra.mxu0 0.0
    %1128 = vmatpush.msra.mxu0 0.0
    %1129 = vmatpush.msra.mxu0 0.0
    %1130 = vmatpush.msra.mxu0 0.0
    %1131 = vmatpush.msra.mxu0 0.0
    %1132 = vmatpush.msra.mxu0 0.0
    %1133 = vmatpush.msra.mxu0 0.0
    %1134 = vmatpush.msra.mxu0 0.0
    %1135 = vmatpush.msra.mxu0 %v157
    %1136 = vmatpush.msra.mxu0 %v154
    %1137 = vmatmul.f32.gmra.mxu0 %v1119
    %v1138 = vpop.f32.mrf.mxu0
    %v1139 = vadd.f32 0.0, %v1138
    %1140 = vdwg.mxu0
    %v1142 = vsel %vm366, %v964, 0
    %1144 = vmatpush.msra.mxu0 0.0
    %1145 = vmatpush.msra.mxu0 0.0
    %1146 = vmatpush.msra.mxu0 0.0
    %1147 = vmatpush.msra.mxu0 0.0
    %1148 = vmatpush.msra.mxu0 0.0
    %1149 = vmatpush.msra.mxu0 0.0
    %1150 = vmatpush.msra.mxu0 0.0
    %1151 = vmatpush.msra.mxu0 0.0
    %1152 = vmatpush.msra.mxu0 0.0
    %1153 = vmatpush.msra.mxu0 0.0
    %1154 = vmatpush.msra.mxu0 0.0
    %1155 = vmatpush.msra.mxu0 0.0
    %1156 = vmatpush.msra.mxu0 0.0
    %1157 = vmatpush.msra.mxu0 0.0
    %1158 = vmatpush.msra.mxu0 %v163
    %1159 = vmatpush.msra.mxu0 %v160
    %1160 = vmatmul.f32.gmra.mxu0 %v1142
    %v1161 = vpop.f32.mrf.mxu0
    %v1162 = vadd.f32 0.0, %v1161
    %1163 = vdwg.mxu0
    %v1164 = vadd.f32 %v983, %v1139
    %v1165 = vadd.f32 %v986, %v1162
    %v1166 = vtanh.pop %v1164
    %v1167 = vtanh.pop %v1165
    %1168 = vmatpush.xpose.msra.mxu0 0.0
    %1169 = vmatpush.xpose.msra.mxu0 0.0
    %1170 = vmatpush.xpose.msra.mxu0 0.0
    %1171 = vmatpush.xpose.msra.mxu0 0.0
    %1172 = vmatpush.xpose.msra.mxu0 0.0
    %1173 = vmatpush.xpose.msra.mxu0 0.0
    %1174 = vmatpush.xpose.msra.mxu0 0.0
    %1175 = vmatpush.xpose.msra.mxu0 0.0
    %1176 = vmatpush.xpose.msra.mxu0 0.0
    %1177 = vmatpush.xpose.msra.mxu0 0.0
    %1178 = vmatpush.xpose.msra.mxu0 0.0
    %1179 = vmatpush.xpose.msra.mxu0 0.0
    %1180 = vmatpush.xpose.msra.mxu0 %v1117
    %1181 = vmatpush.xpose.msra.mxu0 %v1116
    %1182 = vmatpush.xpose.msra.mxu0 %v1115
    %1183 = vmatpush.xpose.msra.mxu0 %v1114
    %1184 = vmatmul.f32.gmra.mxu0 %v131
    %v1185 = vpop.f32.mrf.mxu0
    %v1186 = vadd.f32 0.0, %v1185
    %1187 = vdwg.mxu0
    %1188 = vmatpush.xpose.msra.mxu0 0.0
    %1189 = vmatpush.xpose.msra.mxu0 0.0
    %1190 = vmatpush.xpose.msra.mxu0 0.0
    %1191 = vmatpush.xpose.msra.mxu0 0.0
    %1192 = vmatpush.xpose.msra.mxu0 0.0
    %1193 = vmatpush.xpose.msra.mxu0 0.0
    %1194 = vmatpush.xpose.msra.mxu0 0.0
    %1195 = vmatpush.xpose.msra.mxu0 0.0
    %1196 = vmatpush.xpose.msra.mxu0 0.0
    %1197 = vmatpush.xpose.msra.mxu0 0.0
    %1198 = vmatpush.xpose.msra.mxu0 0.0
    %1199 = vmatpush.xpose.msra.mxu0 0.0
    %1200 = vmatpush.xpose.msra.mxu0 0.0
    %1201 = vmatpush.xpose.msra.mxu0 0.0
    %1202 = vmatpush.xpose.msra.mxu0 %v1167
    %1203 = vmatpush.xpose.msra.mxu0 %v1166
    %1204 = vmatmul.f32.gmra.mxu0 %v132
    %v1205 = vpop.f32.mrf.mxu0
    %v1206 = vadd.f32 0.0, %v1205
    %1207 = vdwg.mxu0
    %v1208 = vsel %vm457, %v1186, -inf
    %1209 = vmax.xlane.f32.xlu0 %v1208
    %v1210 = vpop.xlane.xlu0 %1209
    %v1211 = vsub.f32 %v1186, %v1210
    %v1212 = vmul.f32 %v1211, 1.442695
    %v1213 = vpow.pop %v1212
    %v1214 = vperm.slane %v1213, 0
    %v1215 = vsel %vm473, %v1214, 0.0
    %v1216 = vsel %vm475, %v1215, 0.0
    %1217 = vadd.xlane.f32.xlu0 %v1216
    %v1218 = vpop.xlane.xlu0 %1217
    %v1220 = vsel %vm479, %v1215, 0
    %1222 = vmatpush.msra.mxu0 0.0
    %1223 = vmatpush.msra.mxu0 0.0
    %1224 = vmatpush.msra.mxu0 0.0
    %1225 = vmatpush.msra.mxu0 0.0
    %1226 = vmatpush.msra.mxu0 0.0
    %1227 = vmatpush.msra.mxu0 0.0
    %1228 = vmatpush.msra.mxu0 0.0
    %1229 = vmatpush.msra.mxu0 0.0
    %1230 = vmatpush.msra.mxu0 0.0
    %1231 = vmatpush.msra.mxu0 0.0
    %1232 = vmatpush.msra.mxu0 0.0
    %1233 = vmatpush.msra.mxu0 0.0
    %1234 = vmatpush.msra.mxu0 %v96
    %1235 = vmatpush.msra.mxu0 %v95
    %1236 = vmatpush.msra.mxu0 %v94
    %1237 = vmatpush.msra.mxu0 %v93
    %1238 = vmatmul.f32.gmra.mxu0 %v1220
    %v1239 = vpop.f32.mrf.mxu0
    %v1240 = vadd.f32 0.0, %v1239
    %1241 = vdwg.mxu0
    %v1242 = vrcp.pop %v1218
    %v1243 = vmul.f32 %v1240, %v1242
    %v1244 = vsel %vm505, %v1206, -inf
    %1245 = vmax.xlane.f32.xlu0 %v1244
    %v1246 = vpop.xlane.xlu0 %1245
    %v1247 = vsub.f32 %v1206, %v1246
    %v1248 = vmul.f32 %v1247, 1.442695
    %v1249 = vpow.pop %v1248
    %v1250 = vperm.slane %v1249, 0
    %v1251 = vsel %vm517, %v1250, 0.0
    %v1252 = vsel %vm519, %v1251, 0.0
    %1253 = vadd.xlane.f32.xlu0 %v1252
    %v1254 = vpop.xlane.xlu0 %1253
    %v1256 = vsel %vm366, %v1251, 0
    %1258 = vmatpush.msra.mxu0 0.0
    %1259 = vmatpush.msra.mxu0 0.0
    %1260 = vmatpush.msra.mxu0 0.0
    %1261 = vmatpush.msra.mxu0 0.0
    %1262 = vmatpush.msra.mxu0 0.0
    %1263 = vmatpush.msra.mxu0 0.0
    %1264 = vmatpush.msra.mxu0 0.0
    %1265 = vmatpush.msra.mxu0 0.0
    %1266 = vmatpush.msra.mxu0 0.0
    %1267 = vmatpush.msra.mxu0 0.0
    %1268 = vmatpush.msra.mxu0 0.0
    %1269 = vmatpush.msra.mxu0 0.0
    %1270 = vmatpush.msra.mxu0 0.0
    %1271 = vmatpush.msra.mxu0 0.0
    %1272 = vmatpush.msra.mxu0 %v922
    %1273 = vmatpush.msra.mxu0 %v921
    %1274 = vmatmul.f32.gmra.mxu0 %v1256
    %v1275 = vpop.f32.mrf.mxu0
    %v1276 = vadd.f32 0.0, %v1275
    %1277 = vdwg.mxu0
    %v1278 = vrcp.pop %v1254
    %v1279 = vmul.f32 %v1276, %v1278
    %v1281 = vrot.slane %v1279, 6
    %v1283 = vsel %vm551, %v1243, %v1281
    %s1284 = scalar_lea.vmem [#allocation10], 8
    %1285 = vst [vmem:[%s1284] sm:$0xf] %v1283
    // Predicated region
    $region50: #{tpu_custom_call.1} parent=1 // pred_check
      _
    $region51: #{tpu_custom_call.1} parent=1 // pred_check_branch
      %1287 = sbr.rel (0) target = $region53
    $region52: #{tpu_custom_call.1} parent=1 // pred_region
      %1289 = vsyncadd [#allocation4], 0
      %s1290 = sshll.u32 [#allocation10], 4
      %s1291 = int_to_ptr.vmem [resolvable:$true] %s1290
      %s1292 = sshll.u32 %s8, 4
      %s1293 = int_to_ptr.hbm [resolvable:$true] %s1292
      %1298 = dma.vmem_to_hbm [thread:$0]  %s1291, 192, %s1293, [#allocation4], 64, 64, 4
    $region53: #{tpu_custom_call.1} parent=1 // pred_fallthru
      _
    // Predicated region
    $region54: #{tpu_custom_call.1} parent=1 // pred_check
      _
    $region55: #{tpu_custom_call.1} parent=1 // pred_check_branch
      %1300 = sbr.rel (0) target = $region57
    $region56: #{tpu_custom_call.1} parent=1 // pred_region
      %1302 = dma.done [#allocation4], 192
    $region57: #{tpu_custom_call.1} parent=1 // pred_fallthru
      _
    %1303 = vsyncpa [#allocation3], 1
    %1304 = vsyncpa [#allocation6], 1
    %1305 = vsyncpa [#allocation9], 1
    %1306 = vsyncpa [#allocation4], 1

</llo_original>
